<compile_context>
chip_gen: v5e
topology: v5e:2x2
jax: 0.10.0
libtpu: 0.0.40
codegen_flags: <defaults>
</compile_context>

<pallas_src>
import functools

import jax
import jax.numpy as jnp
import numpy as np
from jax.experimental import pallas as pl
from jax.experimental.pallas import tpu as pltpu

LANE = 128  # pad hidden / action feature dims up to one full lane width


def dqn_policy_kernel(obs_ref, w1_ref, b1_ref, w2_ref, b2_ref, w3_ref, b3_ref,
                      q_ref, act_ref, *, n_actions):
    # bf16 operands feed the MXU natively; accumulate in f32.
    x = obs_ref[...]                                                       # (Bt, n_obs) bf16
    h1 = jnp.dot(x, w1_ref[...], preferred_element_type=jnp.float32) + b1_ref[...]
    h1 = jnp.maximum(h1, 0.0).astype(jnp.bfloat16)                         # (Bt, 128)
    h2 = jnp.dot(h1, w2_ref[...], preferred_element_type=jnp.float32) + b2_ref[...]
    h2 = jnp.maximum(h2, 0.0).astype(jnp.bfloat16)                         # (Bt, 128)
    q = jnp.dot(h2, w3_ref[...], preferred_element_type=jnp.float32) + b3_ref[...]
    q_ref[...] = q                                                         # lane-dense (Bt, 128) store

    # Fused greedy-action selection (torch.argmax semantics: first index of the max).
    qa = q[:, :n_actions]
    m = jnp.max(qa, axis=-1, keepdims=True)
    idx = jax.lax.broadcasted_iota(jnp.int32, qa.shape, 1)
    act = jnp.min(jnp.where(qa == m, idx, n_actions), axis=-1, keepdims=True)
    act_ref[...] = act


def pack_params(w1_pt, b1, w2_pt, b2, w3_pt, b3, hidden=64):
    """PyTorch-layout (out,in) f32 params -> transposed, lane-padded bf16/f32 kernel params."""
    n_obs = w1_pt.shape[1]
    n_actions = w3_pt.shape[0]
    H = LANE
    w1 = jnp.zeros((n_obs, H), jnp.bfloat16).at[:, :hidden].set(w1_pt.T.astype(jnp.bfloat16))
    w2 = jnp.zeros((H, H), jnp.bfloat16).at[:hidden, :hidden].set(w2_pt.T.astype(jnp.bfloat16))
    w3 = jnp.zeros((H, H), jnp.bfloat16).at[:hidden, :n_actions].set(w3_pt.T.astype(jnp.bfloat16))
    b1p = jnp.zeros((1, H), jnp.float32).at[:, :hidden].set(b1.reshape(1, -1))
    b2p = jnp.zeros((1, H), jnp.float32).at[:, :hidden].set(b2.reshape(1, -1))
    b3p = jnp.zeros((1, H), jnp.float32).at[:, :n_actions].set(b3.reshape(1, -1))
    return w1, b1p, w2, b2p, w3, b3p


@functools.partial(jax.jit, static_argnames=("n_actions", "block_b"))
def dqn_policy_forward(obs, w1, b1, w2, b2, w3, b3, *, n_actions, block_b=256):
    """Returns (q_values[B, n_actions] f32, greedy_actions[B] int32)."""
    B, n_obs = obs.shape
    H = LANE
    # Keep the grid to a handful of large batch blocks (good for single-TC v5e/v6e);
    # with B >= 2*block_b the "parallel" grid lets v7x's two TCs each take half.
    if B < block_b:
        block_b = max(8, -(-B // 8) * 8)
    Bp = -(-B // block_b) * block_b

    obs_b = obs.astype(jnp.bfloat16)
    if Bp != B:
        obs_b = jnp.pad(obs_b, ((0, Bp - B), (0, 0)))

    kernel = functools.partial(dqn_policy_kernel, n_actions=n_actions)
    q_pad, act_pad = pl.pallas_call(
        kernel,
        out_shape=[jax.ShapeDtypeStruct((Bp, H), jnp.float32),
                   jax.ShapeDtypeStruct((Bp, 1), jnp.int32)],
        grid=(Bp // block_b,),
        in_specs=[
            pl.BlockSpec((block_b, n_obs), lambda i: (i, 0)),
            # Weights/biases: constant block index -> loaded once, resident across steps.
            pl.BlockSpec((n_obs, H), lambda i: (0, 0)),
            pl.BlockSpec((1, H), lambda i: (0, 0)),
            pl.BlockSpec((H, H), lambda i: (0, 0)),
            pl.BlockSpec((1, H), lambda i: (0, 0)),
            pl.BlockSpec((H, H), lambda i: (0, 0)),
            pl.BlockSpec((1, H), lambda i: (0, 0)),
        ],
        out_specs=[
            pl.BlockSpec((block_b, H), lambda i: (i, 0)),
            pl.BlockSpec((block_b, 1), lambda i: (i, 0)),
        ],
        compiler_params=pltpu.CompilerParams(
            dimension_semantics=("parallel",)),
    )(obs_b, w1, b1, w2, b2, w3, b3)

    return q_pad[:B, :n_actions], act_pad[:B, 0]


def orthogonal_init(key, out_features, in_features, gain=1.0):
    # Mirrors torch.nn.init.orthogonal_ semantics (QR of a Gaussian, sign fix).
    rows, cols = out_features, in_features
    flat = jax.random.normal(key, (max(rows, cols), min(rows, cols)), jnp.float32)
    q, r = jnp.linalg.qr(flat)
    q = q * jnp.sign(jnp.diag(r))
    if rows < cols:
        q = q.T
    return gain * q[:rows, :cols]  # (out_features, in_features), PyTorch layout


if __name__ == "__main__":
    # Shapes implied by the module (e.g. CartPole: obs dim 4, 2 actions), batched
    # to 512 parallel envs so one pallas_call amortizes its launch/DMA overhead.
    B, n_obs, hidden, n_actions = 512, 4, 64, 2

    key = jax.random.PRNGKey(0)
    k_obs, k_w1, k_w2, k_w3, k_b3 = jax.random.split(key, 5)

    obs = jax.random.normal(k_obs, (B, n_obs), jnp.float32)

    # h1, h2: orthogonal weights, zero bias (as in the module's __init__).
    w1_pt = orthogonal_init(k_w1, hidden, n_obs)       # (64, n_obs)
    w2_pt = orthogonal_init(k_w2, hidden, hidden)      # (64, 64)
    b1 = jnp.zeros((hidden,), jnp.float32)
    b2 = jnp.zeros((hidden,), jnp.float32)

    # out: PyTorch default Linear init (uniform +/- 1/sqrt(fan_in)), deterministic here.
    bound = 1.0 / np.sqrt(hidden)
    w3_pt = jax.random.uniform(k_w3, (n_actions, hidden), jnp.float32, -bound, bound)
    b3 = jax.random.uniform(k_b3, (n_actions,), jnp.float32, -bound, bound)

    params = pack_params(w1_pt, b1, w2_pt, b2, w3_pt, b3, hidden=hidden)

    q, act = dqn_policy_forward(obs, *params, n_actions=n_actions)
    q, act = jax.block_until_ready((q, act))

    # Pure-JAX reference with the same bf16 operand rounding (f32 accumulate).
    f32 = lambda a: a.astype(jnp.bfloat16).astype(jnp.float32)
    ref = jnp.maximum(f32(obs) @ f32(w1_pt.T) + b1, 0.0)
    ref = jnp.maximum(f32(ref) @ f32(w2_pt.T) + b2, 0.0)
    ref = f32(ref) @ f32(w3_pt.T) + b3

    np.testing.assert_allclose(np.asarray(q), np.asarray(ref), rtol=1e-2, atol=1e-2)
    np.testing.assert_array_equal(np.asarray(act), np.argmax(np.asarray(q), axis=-1))

    print("KERNEL_OK")
</pallas_src>

<mosaic_0001>
module attributes {stable_mosaic.version = 11 : i64} {
  func.func @dqn_policy_kernel(%arg0: i32, %arg1: memref<256x4xbf16, #tpu.memory_space<vmem>>, %arg2: memref<4x128xbf16, #tpu.memory_space<vmem>>, %arg3: memref<1x128xf32, #tpu.memory_space<vmem>>, %arg4: memref<128x128xbf16, #tpu.memory_space<vmem>>, %arg5: memref<1x128xf32, #tpu.memory_space<vmem>>, %arg6: memref<128x128xbf16, #tpu.memory_space<vmem>>, %arg7: memref<1x128xf32, #tpu.memory_space<vmem>>, %arg8: memref<256x128xf32, #tpu.memory_space<vmem>>, %arg9: memref<256x1xi32, #tpu.memory_space<vmem>>) attributes {dimension_semantics = [#tpu.dimension_semantics<parallel>], iteration_bounds = array<i64: 2>, scalar_prefetch = 0 : i64, scratch_operands = 0 : i64, tpu.core_type = #tpu.core_type<tc>, window_params = [{transform_indices = @transform_0, window_bounds = array<i64: 256, 4>}, {pipeline_mode = #tpu.pipeline_mode<synchronous>, transform_indices = @transform_1, window_bounds = array<i64: 4, 128>}, {pipeline_mode = #tpu.pipeline_mode<synchronous>, transform_indices = @transform_2, window_bounds = array<i64: 1, 128>}, {pipeline_mode = #tpu.pipeline_mode<synchronous>, transform_indices = @transform_3, window_bounds = array<i64: 128, 128>}, {pipeline_mode = #tpu.pipeline_mode<synchronous>, transform_indices = @transform_4, window_bounds = array<i64: 1, 128>}, {pipeline_mode = #tpu.pipeline_mode<synchronous>, transform_indices = @transform_5, window_bounds = array<i64: 128, 128>}, {pipeline_mode = #tpu.pipeline_mode<synchronous>, transform_indices = @transform_6, window_bounds = array<i64: 1, 128>}, {transform_indices = @transform_7, window_bounds = array<i64: 256, 128>}, {transform_indices = @transform_8, window_bounds = array<i64: 256, 1>}]} {
    %c0 = arith.constant 0 : index
    %c0_0 = arith.constant 0 : index
    %0 = vector.load %arg1[%c0, %c0_0] : memref<256x4xbf16, #tpu.memory_space<vmem>>, vector<256x4xbf16>
    %c0_1 = arith.constant 0 : index
    %c0_2 = arith.constant 0 : index
    %1 = vector.load %arg2[%c0_1, %c0_2] : memref<4x128xbf16, #tpu.memory_space<vmem>>, vector<4x128xbf16>
    %cst = arith.constant dense<0.000000e+00> : vector<256x128xf32>
    %2 = tpu.matmul %0, %1, %cst {dimension_numbers = #tpu.dot_dimension_numbers<[1], [0], [0], [1], [0, 0, 1, 1], [], []>} : vector<256x4xbf16>, vector<4x128xbf16>, vector<256x128xf32> -> vector<256x128xf32>
    %c0_3 = arith.constant 0 : index
    %c0_4 = arith.constant 0 : index
    %3 = vector.load %arg3[%c0_3, %c0_4] : memref<1x128xf32, #tpu.memory_space<vmem>>, vector<1x128xf32>
    %4 = vector.broadcast %3 : vector<1x128xf32> to vector<256x128xf32>
    %5 = arith.addf %2, %4 : vector<256x128xf32>
    %cst_5 = arith.constant 0.000000e+00 : f32
    %6 = vector.broadcast %cst_5 : f32 to vector<256x128xf32>
    %7 = arith.maximumf %5, %6 : vector<256x128xf32>
    %8 = arith.truncf %7 : vector<256x128xf32> to vector<256x128xbf16>
    %c0_6 = arith.constant 0 : index
    %c0_7 = arith.constant 0 : index
    %9 = vector.load %arg4[%c0_6, %c0_7] : memref<128x128xbf16, #tpu.memory_space<vmem>>, vector<128x128xbf16>
    %cst_8 = arith.constant dense<0.000000e+00> : vector<256x128xf32>
    %10 = tpu.matmul %8, %9, %cst_8 {dimension_numbers = #tpu.dot_dimension_numbers<[1], [0], [0], [1], [0, 0, 1, 1], [], []>} : vector<256x128xbf16>, vector<128x128xbf16>, vector<256x128xf32> -> vector<256x128xf32>
    %c0_9 = arith.constant 0 : index
    %c0_10 = arith.constant 0 : index
    %11 = vector.load %arg5[%c0_9, %c0_10] : memref<1x128xf32, #tpu.memory_space<vmem>>, vector<1x128xf32>
    %12 = vector.broadcast %11 : vector<1x128xf32> to vector<256x128xf32>
    %13 = arith.addf %10, %12 : vector<256x128xf32>
    %cst_11 = arith.constant 0.000000e+00 : f32
    %14 = vector.broadcast %cst_11 : f32 to vector<256x128xf32>
    %15 = arith.maximumf %13, %14 : vector<256x128xf32>
    %16 = arith.truncf %15 : vector<256x128xf32> to vector<256x128xbf16>
    %c0_12 = arith.constant 0 : index
    %c0_13 = arith.constant 0 : index
    %17 = vector.load %arg6[%c0_12, %c0_13] : memref<128x128xbf16, #tpu.memory_space<vmem>>, vector<128x128xbf16>
    %cst_14 = arith.constant dense<0.000000e+00> : vector<256x128xf32>
    %18 = tpu.matmul %16, %17, %cst_14 {dimension_numbers = #tpu.dot_dimension_numbers<[1], [0], [0], [1], [0, 0, 1, 1], [], []>} : vector<256x128xbf16>, vector<128x128xbf16>, vector<256x128xf32> -> vector<256x128xf32>
    %c0_15 = arith.constant 0 : index
    %c0_16 = arith.constant 0 : index
    %19 = vector.load %arg7[%c0_15, %c0_16] : memref<1x128xf32, #tpu.memory_space<vmem>>, vector<1x128xf32>
    %20 = vector.broadcast %19 : vector<1x128xf32> to vector<256x128xf32>
    %21 = arith.addf %18, %20 : vector<256x128xf32>
    %c0_17 = arith.constant 0 : index
    %c0_18 = arith.constant 0 : index
    %22 = vector.load %arg8[%c0_17, %c0_18] : memref<256x128xf32, #tpu.memory_space<vmem>>, vector<256x128xf32>
    tpu.vector_store %arg8[%c0_17, %c0_18], %21 {strides = array<i32>} : memref<256x128xf32, #tpu.memory_space<vmem>>, vector<256x128xf32>,
    %23 = vector.extract_strided_slice %21 {offsets = [0, 0], sizes = [256, 2], strides = [1, 1]} : vector<256x128xf32> to vector<256x2xf32>
    %cst_19 = arith.constant dense<0xFF800000> : vector<256xf32>
    %24 = vector.multi_reduction <maximumf>, %23, %cst_19 [1] : vector<256x2xf32> to vector<256xf32>
    %25 = vector.shape_cast %24 : vector<256xf32> to vector<256x1xf32>
    %26 = tpu.iota {dimensions = array<i32: 1>} : vector<256x2xi32>
    %27 = vector.broadcast %25 : vector<256x1xf32> to vector<256x2xf32>
    %28 = arith.cmpf oeq, %23, %27 : vector<256x2xf32>
    %c2_i32 = arith.constant 2 : i32
    %29 = vector.broadcast %c2_i32 : i32 to vector<256x2xi32>
    %30 = arith.select %28, %26, %29 : vector<256x2xi1>, vector<256x2xi32>
    %cst_20 = arith.constant dense<2147483647> : vector<256xi32>
    %31 = vector.multi_reduction <minsi>, %30, %cst_20 [1] : vector<256x2xi32> to vector<256xi32>
    %32 = vector.shape_cast %31 : vector<256xi32> to vector<256x1xi32>
    %c0_21 = arith.constant 0 : index
    %c0_22 = arith.constant 0 : index
    %33 = vector.load %arg9[%c0_21, %c0_22] : memref<256x1xi32, #tpu.memory_space<vmem>>, vector<256x1xi32>
    tpu.vector_store %arg9[%c0_21, %c0_22], %32 {strides = array<i32>} : memref<256x1xi32, #tpu.memory_space<vmem>>, vector<256x1xi32>,
    return
  }
  func.func @transform_0(%arg0: i32) -> (i32, i32) {
    %c0_i32 = arith.constant 0 : i32
    %c0_i32_0 = arith.constant 0 : i32
    return %arg0, %c0_i32 : i32, i32
  }
  func.func @transform_1(%arg0: i32) -> (i32, i32) {
    %c0_i32 = arith.constant 0 : i32
    %c0_i32_0 = arith.constant 0 : i32
    %c0_i32_1 = arith.constant 0 : i32
    return %c0_i32, %c0_i32_0 : i32, i32
  }
  func.func @transform_2(%arg0: i32) -> (i32, i32) {
    %c0_i32 = arith.constant 0 : i32
    %c0_i32_0 = arith.constant 0 : i32
    %c0_i32_1 = arith.constant 0 : i32
    return %c0_i32, %c0_i32_0 : i32, i32
  }
  func.func @transform_3(%arg0: i32) -> (i32, i32) {
    %c0_i32 = arith.constant 0 : i32
    %c0_i32_0 = arith.constant 0 : i32
    %c0_i32_1 = arith.constant 0 : i32
    return %c0_i32, %c0_i32_0 : i32, i32
  }
  func.func @transform_4(%arg0: i32) -> (i32, i32) {
    %c0_i32 = arith.constant 0 : i32
    %c0_i32_0 = arith.constant 0 : i32
    %c0_i32_1 = arith.constant 0 : i32
    return %c0_i32, %c0_i32_0 : i32, i32
  }
  func.func @transform_5(%arg0: i32) -> (i32, i32) {
    %c0_i32 = arith.constant 0 : i32
    %c0_i32_0 = arith.constant 0 : i32
    %c0_i32_1 = arith.constant 0 : i32
    return %c0_i32, %c0_i32_0 : i32, i32
  }
  func.func @transform_6(%arg0: i32) -> (i32, i32) {
    %c0_i32 = arith.constant 0 : i32
    %c0_i32_0 = arith.constant 0 : i32
    %c0_i32_1 = arith.constant 0 : i32
    return %c0_i32, %c0_i32_0 : i32, i32
  }
  func.func @transform_7(%arg0: i32) -> (i32, i32) {
    %c0_i32 = arith.constant 0 : i32
    %c0_i32_0 = arith.constant 0 : i32
    return %arg0, %c0_i32 : i32, i32
  }
  func.func @transform_8(%arg0: i32) -> (i32, i32) {
    %c0_i32 = arith.constant 0 : i32
    %c0_i32_0 = arith.constant 0 : i32
    return %arg0, %c0_i32 : i32, i32
  }
}

</mosaic_0001>

<llo_original>
// kernel: dqn_policy_forward.1
$region0: #{dqn_policy_forward.1}
  #allocation0 [shape = 'u32[]', space=smem, size = 0x4, offset = 0x4, fixed_abs, tag = 'smem constant byte address 0x4 - core index']
  #allocation1 [shape = 'u32[72,128]{1,0:T(1,128)}', space=vmem, size = 0x9000, scoped, tag = 'internal scratch']
  %s0 = inlined_call_operand.vmem [shape: bf16[512,4], index: 0, kind: input, shape index: {}]
  %s1 = inlined_call_operand.vmem [shape: bf16[4,128], index: 1, kind: input, shape index: {}]
  %s2 = inlined_call_operand.vmem [shape: f32[1,128], index: 2, kind: input, shape index: {}]
  %s3 = inlined_call_operand.vmem [shape: bf16[128,128], index: 3, kind: input, shape index: {}]
  %s4 = inlined_call_operand.vmem [shape: f32[1,128], index: 4, kind: input, shape index: {}]
  %s5 = inlined_call_operand.vmem [shape: bf16[128,128], index: 5, kind: input, shape index: {}]
  %s6 = inlined_call_operand.vmem [shape: f32[1,128], index: 6, kind: input, shape index: {}]
  %s7 = inlined_call_operand.vmem [shape: f32[512,128], index: 7, kind: output, shape index: {0}]
  %s8 = inlined_call_operand.vmem [shape: s32[512,1], index: 8, kind: output, shape index: {1}]
  %9 = xla_tuple %s7, %s8
  %s10 = sld [smem:[#allocation0]]
  $region69: #{dqn_policy_forward.1} parent=0
    _
  %s12 = ssub.s32 1, %s10
  %s13 = scalar_select 0, %s12, %s10
  loop: start=0, step=1, limit=4
  $region2: #{dqn_policy_forward.1} parent=0 // loop_pre_header
    _
  $region3: #{dqn_policy_forward.1} parent=0 // loop_header
    %s15 = sphi 0, %s19
    %p16 = scmp.ge.s32.totalorder %s15, 4
    %s25 = sphi 0, %s27
    %s28 = sphi 0, %s25
    %s29 = sphi 0, %s28
    %s45 = sphi 0, %s29
    %s49 = sphi 0, %s49
    %s51 = sphi 0, %s49
    %s52 = sphi 0, %s51
    %s66 = sphi 0, %s52
    %s70 = sphi 0, %s70
    %s72 = sphi 0, %s70
    %s73 = sphi 0, %s72
    %s87 = sphi 0, %s73
    %s91 = sphi 0, %s91
    %s93 = sphi 0, %s91
    %s94 = sphi 0, %s93
    %s108 = sphi 0, %s94
    %s112 = sphi 0, %s112
    %s114 = sphi 0, %s112
    %s115 = sphi 0, %s114
    %s129 = sphi 0, %s115
    %s133 = sphi 0, %s133
    %s135 = sphi 0, %s133
    %s136 = sphi 0, %s135
    %s150 = sphi 0, %s136
    %s154 = sphi 0, %s154
    %s156 = sphi 0, %s154
    %s157 = sphi 0, %s156
    %s171 = sphi 0, %s157
    %s177 = sphi 0, %s179
    %s180 = sphi 0, %s177
    %s181 = sphi 0, %s180
    %s197 = sphi 0, %s181
    %s203 = sphi 0, %s205
    %s206 = sphi 0, %s203
    %s207 = sphi 0, %s206
    %s223 = sphi 0, %s207
  $region4: #{dqn_policy_forward.1} parent=0 // loop_header_branch
    %18 = sbr.rel (%p16) target = $region8
  $region5: #{dqn_policy_forward.1} parent=0 // loop_body
    %s20 = ssub.s32 %s15, 1
    %s21 = ssub.s32 %s15, 2
    %s22 = sadd.s32 %s15, 1
    %s23 = ssub.s32 %s15, %s22
    %p24 = scmp.eq.s32.totalorder %s23, 0
    %s26 = sadd.s32 %s25, 1
    %s27 = scalar_select %p24, %s25, %s26
    %p30 = pneg %p24
    %p31 = scmp.eq.s32.totalorder %s15, 1
    %p32 = por %p30, %p31
    %p33 = scmp.ne.s32.totalorder %s25, %s28
    %p34 = scmp.eq.s32.totalorder %s15, 0
    %p35 = por %p33, %p34
    %p36 = scmp.ne.s32.totalorder %s25, %s28
    %p37 = scmp.eq.s32.totalorder %s20, 1
    %p38 = por %p36, %p37
    %p39 = scmp.ne.s32.totalorder %s28, %s29
    %p40 = scmp.eq.s32.totalorder %s20, 0
    %p41 = por %p39, %p40
    %p42 = scmp.ne.s32.totalorder %s28, %s29
    %p43 = scmp.eq.s32.totalorder %s21, 1
    %p44 = por %p42, %p43
    %p46 = scmp.ne.s32.totalorder %s29, %s45
    %p47 = scmp.eq.s32.totalorder %s21, 0
    %p48 = por %p46, %p47
    %s50 = sadd.s32 %s49, 1
    %p53 = scmp.eq.s32.totalorder %s15, 1
    %p54 = scmp.ne.s32.totalorder %s49, %s51
    %p55 = scmp.eq.s32.totalorder %s15, 0
    %p56 = por %p54, %p55
    %p57 = scmp.ne.s32.totalorder %s49, %s51
    %p58 = scmp.eq.s32.totalorder %s20, 1
    %p59 = por %p57, %p58
    %p60 = scmp.ne.s32.totalorder %s51, %s52
    %p61 = scmp.eq.s32.totalorder %s20, 0
    %p62 = por %p60, %p61
    %p63 = scmp.ne.s32.totalorder %s51, %s52
    %p64 = scmp.eq.s32.totalorder %s21, 1
    %p65 = por %p63, %p64
    %p67 = scmp.ne.s32.totalorder %s52, %s66
    %p68 = scmp.eq.s32.totalorder %s21, 0
    %p69 = por %p67, %p68
    %s71 = sadd.s32 %s70, 1
    %p74 = scmp.eq.s32.totalorder %s15, 1
    %p75 = scmp.ne.s32.totalorder %s70, %s72
    %p76 = scmp.eq.s32.totalorder %s15, 0
    %p77 = por %p75, %p76
    %p78 = scmp.ne.s32.totalorder %s70, %s72
    %p79 = scmp.eq.s32.totalorder %s20, 1
    %p80 = por %p78, %p79
    %p81 = scmp.ne.s32.totalorder %s72, %s73
    %p82 = scmp.eq.s32.totalorder %s20, 0
    %p83 = por %p81, %p82
    %p84 = scmp.ne.s32.totalorder %s72, %s73
    %p85 = scmp.eq.s32.totalorder %s21, 1
    %p86 = por %p84, %p85
    %p88 = scmp.ne.s32.totalorder %s73, %s87
    %p89 = scmp.eq.s32.totalorder %s21, 0
    %p90 = por %p88, %p89
    %s92 = sadd.s32 %s91, 1
    %p95 = scmp.eq.s32.totalorder %s15, 1
    %p96 = scmp.ne.s32.totalorder %s91, %s93
    %p97 = scmp.eq.s32.totalorder %s15, 0
    %p98 = por %p96, %p97
    %p99 = scmp.ne.s32.totalorder %s91, %s93
    %p100 = scmp.eq.s32.totalorder %s20, 1
    %p101 = por %p99, %p100
    %p102 = scmp.ne.s32.totalorder %s93, %s94
    %p103 = scmp.eq.s32.totalorder %s20, 0
    %p104 = por %p102, %p103
    %p105 = scmp.ne.s32.totalorder %s93, %s94
    %p106 = scmp.eq.s32.totalorder %s21, 1
    %p107 = por %p105, %p106
    %p109 = scmp.ne.s32.totalorder %s94, %s108
    %p110 = scmp.eq.s32.totalorder %s21, 0
    %p111 = por %p109, %p110
    %s113 = sadd.s32 %s112, 1
    %p116 = scmp.eq.s32.totalorder %s15, 1
    %p117 = scmp.ne.s32.totalorder %s112, %s114
    %p118 = scmp.eq.s32.totalorder %s15, 0
    %p119 = por %p117, %p118
    %p120 = scmp.ne.s32.totalorder %s112, %s114
    %p121 = scmp.eq.s32.totalorder %s20, 1
    %p122 = por %p120, %p121
    %p123 = scmp.ne.s32.totalorder %s114, %s115
    %p124 = scmp.eq.s32.totalorder %s20, 0
    %p125 = por %p123, %p124
    %p126 = scmp.ne.s32.totalorder %s114, %s115
    %p127 = scmp.eq.s32.totalorder %s21, 1
    %p128 = por %p126, %p127
    %p130 = scmp.ne.s32.totalorder %s115, %s129
    %p131 = scmp.eq.s32.totalorder %s21, 0
    %p132 = por %p130, %p131
    %s134 = sadd.s32 %s133, 1
    %p137 = scmp.eq.s32.totalorder %s15, 1
    %p138 = scmp.ne.s32.totalorder %s133, %s135
    %p139 = scmp.eq.s32.totalorder %s15, 0
    %p140 = por %p138, %p139
    %p141 = scmp.ne.s32.totalorder %s133, %s135
    %p142 = scmp.eq.s32.totalorder %s20, 1
    %p143 = por %p141, %p142
    %p144 = scmp.ne.s32.totalorder %s135, %s136
    %p145 = scmp.eq.s32.totalorder %s20, 0
    %p146 = por %p144, %p145
    %p147 = scmp.ne.s32.totalorder %s135, %s136
    %p148 = scmp.eq.s32.totalorder %s21, 1
    %p149 = por %p147, %p148
    %p151 = scmp.ne.s32.totalorder %s136, %s150
    %p152 = scmp.eq.s32.totalorder %s21, 0
    %p153 = por %p151, %p152
    %s155 = sadd.s32 %s154, 1
    %p158 = scmp.eq.s32.totalorder %s15, 1
    %p159 = scmp.ne.s32.totalorder %s154, %s156
    %p160 = scmp.eq.s32.totalorder %s15, 0
    %p161 = por %p159, %p160
    %p162 = scmp.ne.s32.totalorder %s154, %s156
    %p163 = scmp.eq.s32.totalorder %s20, 1
    %p164 = por %p162, %p163
    %p165 = scmp.ne.s32.totalorder %s156, %s157
    %p166 = scmp.eq.s32.totalorder %s20, 0
    %p167 = por %p165, %p166
    %p168 = scmp.ne.s32.totalorder %s156, %s157
    %p169 = scmp.eq.s32.totalorder %s21, 1
    %p170 = por %p168, %p169
    %p172 = scmp.ne.s32.totalorder %s157, %s171
    %p173 = scmp.eq.s32.totalorder %s21, 0
    %p174 = por %p172, %p173
    %s175 = ssub.s32 %s15, %s22
    %p176 = scmp.eq.s32.totalorder %s175, 0
    %s178 = sadd.s32 %s177, 1
    %s179 = scalar_select %p176, %s177, %s178
    %p182 = pneg %p176
    %p183 = scmp.eq.s32.totalorder %s15, 1
    %p184 = por %p182, %p183
    %p185 = scmp.ne.s32.totalorder %s177, %s180
    %p186 = scmp.eq.s32.totalorder %s15, 0
    %p187 = por %p185, %p186
    %p188 = scmp.ne.s32.totalorder %s177, %s180
    %p189 = scmp.eq.s32.totalorder %s20, 1
    %p190 = por %p188, %p189
    %p191 = scmp.ne.s32.totalorder %s180, %s181
    %p192 = scmp.eq.s32.totalorder %s20, 0
    %p193 = por %p191, %p192
    %p194 = scmp.ne.s32.totalorder %s180, %s181
    %p195 = scmp.eq.s32.totalorder %s21, 1
    %p196 = por %p194, %p195
    %p198 = scmp.ne.s32.totalorder %s181, %s197
    %p199 = scmp.eq.s32.totalorder %s21, 0
    %p200 = por %p198, %p199
    %s201 = ssub.s32 %s15, %s22
    %p202 = scmp.eq.s32.totalorder %s201, 0
    %s204 = sadd.s32 %s203, 1
    %s205 = scalar_select %p202, %s203, %s204
    %p208 = pneg %p202
    %p209 = scmp.eq.s32.totalorder %s15, 1
    %p210 = por %p208, %p209
    %p211 = scmp.ne.s32.totalorder %s203, %s206
    %p212 = scmp.eq.s32.totalorder %s15, 0
    %p213 = por %p211, %p212
    %p214 = scmp.ne.s32.totalorder %s203, %s206
    %p215 = scmp.eq.s32.totalorder %s20, 1
    %p216 = por %p214, %p215
    %p217 = scmp.ne.s32.totalorder %s206, %s207
    %p218 = scmp.eq.s32.totalorder %s20, 0
    %p219 = por %p217, %p218
    %p220 = scmp.ne.s32.totalorder %s206, %s207
    %p221 = scmp.eq.s32.totalorder %s21, 1
    %p222 = por %p220, %p221
    %p224 = scmp.ne.s32.totalorder %s207, %s223
    %p225 = scmp.eq.s32.totalorder %s21, 0
    %p226 = por %p224, %p225
    %p227 = scmp.le.s32.totalorder 1, %s15
    %p228 = scmp.lt.s32.totalorder %s15, 3
    %p229 = pnand %p227, %p228
    %p230 = pneg %p229
    // Predicated region
    $region9: #{dqn_policy_forward.1} parent=5 // pred_check
      _
    $region10: #{dqn_policy_forward.1} parent=5 // pred_check_branch
      %232 = sbr.rel (%p229) target = $region12
    $region11: #{dqn_policy_forward.1} parent=5 // pred_region
      %s233 = ssub.s32 %s15, 1
      // Predicated region
      $region13: #{dqn_policy_forward.1} parent=11 // pred_check
        %p234 = pneg %p62
      $region14: #{dqn_policy_forward.1} parent=11 // pred_check_branch
        %236 = sbr.rel (%p234) target = $region16
      $region15: #{dqn_policy_forward.1} parent=11 // pred_region
        _
      $region16: #{dqn_policy_forward.1} parent=11 // pred_fallthru
        _
      // Predicated region
      $region17: #{dqn_policy_forward.1} parent=11 // pred_check
        %p237 = pneg %p83
      $region18: #{dqn_policy_forward.1} parent=11 // pred_check_branch
        %239 = sbr.rel (%p237) target = $region20
      $region19: #{dqn_policy_forward.1} parent=11 // pred_region
        _
      $region20: #{dqn_policy_forward.1} parent=11 // pred_fallthru
        _
      // Predicated region
      $region21: #{dqn_policy_forward.1} parent=11 // pred_check
        %p240 = pneg %p104
      $region22: #{dqn_policy_forward.1} parent=11 // pred_check_branch
        %242 = sbr.rel (%p240) target = $region24
      $region23: #{dqn_policy_forward.1} parent=11 // pred_region
        _
      $region24: #{dqn_policy_forward.1} parent=11 // pred_fallthru
        _
      // Predicated region
      $region25: #{dqn_policy_forward.1} parent=11 // pred_check
        %p243 = pneg %p125
      $region26: #{dqn_policy_forward.1} parent=11 // pred_check_branch
        %245 = sbr.rel (%p243) target = $region28
      $region27: #{dqn_policy_forward.1} parent=11 // pred_region
        _
      $region28: #{dqn_policy_forward.1} parent=11 // pred_fallthru
        _
      // Predicated region
      $region29: #{dqn_policy_forward.1} parent=11 // pred_check
        %p246 = pneg %p146
      $region30: #{dqn_policy_forward.1} parent=11 // pred_check_branch
        %248 = sbr.rel (%p246) target = $region32
      $region31: #{dqn_policy_forward.1} parent=11 // pred_region
        _
      $region32: #{dqn_policy_forward.1} parent=11 // pred_fallthru
        _
      // Predicated region
      $region33: #{dqn_policy_forward.1} parent=11 // pred_check
        %p249 = pneg %p167
      $region34: #{dqn_policy_forward.1} parent=11 // pred_check_branch
        %251 = sbr.rel (%p249) target = $region36
      $region35: #{dqn_policy_forward.1} parent=11 // pred_region
        _
      $region36: #{dqn_policy_forward.1} parent=11 // pred_fallthru
        _
    $region12: #{dqn_policy_forward.1} parent=5 // pred_fallthru
      _
    %p252 = scmp.lt.s32.totalorder %s15, 2
    // Predicated region
    $region37: #{dqn_policy_forward.1} parent=5 // pred_check
      %p253 = pneg %p252
    $region38: #{dqn_policy_forward.1} parent=5 // pred_check_branch
      %255 = sbr.rel (%p253) target = $region40
    $region39: #{dqn_policy_forward.1} parent=5 // pred_region
      // Predicated region
      $region41: #{dqn_policy_forward.1} parent=39 // pred_check
        %p256 = pneg %p35
      $region42: #{dqn_policy_forward.1} parent=39 // pred_check_branch
        %258 = sbr.rel (%p256) target = $region44
      $region43: #{dqn_policy_forward.1} parent=39 // pred_region
        %s259 = smul.u32 32, %s15
        %p260 = scmp.lt.s32.totalorder %s259, 63
        %s261 = scalar_select %p260, %s259, 63
        %s262 = smul.addr %s261, 4
        %s263 = scalar_lea.vmem %s0, %s262
        %s264 = smul.u32 32, %s15
      $region44: #{dqn_policy_forward.1} parent=39 // pred_fallthru
        _
    $region40: #{dqn_policy_forward.1} parent=5 // pred_fallthru
      _
    %p265 = scmp.le.s32.totalorder 1, %s15
    %p266 = scmp.lt.s32.totalorder %s15, 3
    %p267 = pnand %p265, %p266
    %p268 = pneg %p267
    // Predicated region
    $region45: #{dqn_policy_forward.1} parent=5 // pred_check
      _
    $region46: #{dqn_policy_forward.1} parent=5 // pred_check_branch
      %270 = sbr.rel (%p267) target = $region48
    $region47: #{dqn_policy_forward.1} parent=5 // pred_region
      %s271 = ssub.s32 %s15, 1
      %s272 = smul.u32 32, %s20
      %p273 = scmp.lt.s32.totalorder %s272, 63
      %s274 = scalar_select %p273, %s272, 63
      %s275 = smul.addr %s274, 4
      %s276 = scalar_lea.vmem %s0, %s275
      %p277 = pneg %p41
      %p278 = pneg %p38
      %p279 = pneg %p62
      %p280 = pneg %p59
      %p281 = pneg %p83
      %p282 = pneg %p80
      %p283 = pneg %p104
      %p284 = pneg %p101
      %p285 = pneg %p125
      %p286 = pneg %p122
      %p287 = pneg %p146
      %p288 = pneg %p143
      %p289 = pneg %p167
      %p290 = pneg %p164
      %p291 = pneg %p193
      %p292 = pneg %p190
      %s293 = smul.u32 32, %s20
      %p294 = scmp.lt.s32.totalorder %s293, 63
      %s295 = scalar_select %p294, %s293, 63
      %s296 = smul.addr %s295, 8
      %s297 = scalar_lea.vmem %s7, %s296
      %p298 = pneg %p219
      %p299 = pneg %p216
      %s300 = smul.u32 32, %s20
      %p301 = scmp.lt.s32.totalorder %s300, 63
      %s302 = scalar_select %p301, %s300, 63
      %s303 = smul.addr %s302, 8
      %s304 = scalar_lea.vmem %s8, %s303
      %s305 = smul.u32 32, %s20
      %p306 = scmp.lt.s32.totalorder %s305, 63
      %s307 = scalar_select %p306, %s305, 63
      %s308 = smul.addr %s307, 4
      %s309 = scalar_lea.vmem %s0, %s308
      %s310 = smul.u32 32, %s20
      %s311 = smul.u32 32, %s20
      %p312 = scmp.lt.s32.totalorder %s311, 63
      %s313 = scalar_select %p312, %s311, 63
      %s314 = smul.addr %s313, 8
      %s315 = scalar_lea.vmem %s7, %s314
      %s316 = smul.u32 32, %s20
      %s317 = smul.u32 32, %s20
      %p318 = scmp.lt.s32.totalorder %s317, 63
      %s319 = scalar_select %p318, %s317, 63
      %s320 = smul.addr %s319, 8
      %s321 = scalar_lea.vmem %s8, %s320
      %s322 = smul.u32 32, %s20
      %v324 = vld [vmem:[%s309] sm:$0xf]
      %v325 = vld [vmem:[%s309 + $0x4] sm:$0xf]
      %v326 = vld [vmem:[%s309 + $0x8] sm:$0xf]
      %v327 = vld [vmem:[%s309 + $0xc] sm:$0xf]
      %v328 = vld [vmem:[%s309 + $0x10] sm:$0xf]
      %v329 = vld [vmem:[%s309 + $0x14] sm:$0xf]
      %v330 = vld [vmem:[%s309 + $0x18] sm:$0xf]
      %v331 = vld [vmem:[%s309 + $0x1c] sm:$0xf]
      %v332 = vld [vmem:[%s309 + $0x20] sm:$0xf]
      %v333 = vld [vmem:[%s309 + $0x24] sm:$0xf]
      %v334 = vld [vmem:[%s309 + $0x28] sm:$0xf]
      %v335 = vld [vmem:[%s309 + $0x2c] sm:$0xf]
      %v336 = vld [vmem:[%s309 + $0x30] sm:$0xf]
      %v337 = vld [vmem:[%s309 + $0x34] sm:$0xf]
      %v338 = vld [vmem:[%s309 + $0x38] sm:$0xf]
      %v339 = vld [vmem:[%s309 + $0x3c] sm:$0xf]
      %v340 = vld [vmem:[%s309 + $0x40] sm:$0xf]
      %v341 = vld [vmem:[%s309 + $0x44] sm:$0xf]
      %v342 = vld [vmem:[%s309 + $0x48] sm:$0xf]
      %v343 = vld [vmem:[%s309 + $0x4c] sm:$0xf]
      %v344 = vld [vmem:[%s309 + $0x50] sm:$0xf]
      %v345 = vld [vmem:[%s309 + $0x54] sm:$0xf]
      %v346 = vld [vmem:[%s309 + $0x58] sm:$0xf]
      %v347 = vld [vmem:[%s309 + $0x5c] sm:$0xf]
      %v348 = vld [vmem:[%s309 + $0x60] sm:$0xf]
      %v349 = vld [vmem:[%s309 + $0x64] sm:$0xf]
      %v350 = vld [vmem:[%s309 + $0x68] sm:$0xf]
      %v351 = vld [vmem:[%s309 + $0x6c] sm:$0xf]
      %v352 = vld [vmem:[%s309 + $0x70] sm:$0xf]
      %v353 = vld [vmem:[%s309 + $0x74] sm:$0xf]
      %v354 = vld [vmem:[%s309 + $0x78] sm:$0xf]
      %v355 = vld [vmem:[%s309 + $0x7c] sm:$0xf]
      %v356 = vld [vmem:[%s1] sm:$0x3]
      %v357 = vld [vmem:[%s2] sm:$0x1]
      %v359 = vperm.slane %v357, 0
      %v393 = vunpack.c.l.b16 %v324
      %v394 = vunpack.c.l.b16 %v325
      %v395 = vunpack.c.l.b16 %v326
      %v396 = vunpack.c.l.b16 %v327
      %v397 = vunpack.c.l.b16 %v328
      %v398 = vunpack.c.l.b16 %v329
      %v399 = vunpack.c.l.b16 %v330
      %v400 = vunpack.c.l.b16 %v331
      %v401 = vunpack.c.l.b16 %v332
      %v402 = vunpack.c.l.b16 %v333
      %v403 = vunpack.c.l.b16 %v334
      %v404 = vunpack.c.l.b16 %v335
      %v405 = vunpack.c.l.b16 %v336
      %v406 = vunpack.c.l.b16 %v337
      %v407 = vunpack.c.l.b16 %v338
      %v408 = vunpack.c.l.b16 %v339
      %v409 = vunpack.c.l.b16 %v340
      %v410 = vunpack.c.l.b16 %v341
      %v411 = vunpack.c.l.b16 %v342
      %v412 = vunpack.c.l.b16 %v343
      %v413 = vunpack.c.l.b16 %v344
      %v414 = vunpack.c.l.b16 %v345
      %v415 = vunpack.c.l.b16 %v346
      %v416 = vunpack.c.l.b16 %v347
      %v417 = vunpack.c.l.b16 %v348
      %v418 = vunpack.c.l.b16 %v349
      %v419 = vunpack.c.l.b16 %v350
      %v420 = vunpack.c.l.b16 %v351
      %v421 = vunpack.c.l.b16 %v352
      %v422 = vunpack.c.l.b16 %v353
      %v423 = vunpack.c.l.b16 %v354
      %v424 = vunpack.c.l.b16 %v355
      %v425 = vpack.c.b16 %v394, %v393
      %v426 = vpack.c.b16 %v396, %v395
      %v427 = vpack.c.b16 %v398, %v397
      %v428 = vpack.c.b16 %v400, %v399
      %v429 = vpack.c.b16 %v402, %v401
      %v430 = vpack.c.b16 %v404, %v403
      %v431 = vpack.c.b16 %v406, %v405
      %v432 = vpack.c.b16 %v408, %v407
      %v433 = vpack.c.b16 %v410, %v409
      %v434 = vpack.c.b16 %v412, %v411
      %v435 = vpack.c.b16 %v414, %v413
      %v436 = vpack.c.b16 %v416, %v415
      %v437 = vpack.c.b16 %v418, %v417
      %v438 = vpack.c.b16 %v420, %v419
      %v439 = vpack.c.b16 %v422, %v421
      %v440 = vpack.c.b16 %v424, %v423
      %vm441 = vcmask 31744
      %v443 = vsel %vm441, %v425, 0
      %v446 = vsel %vm441, %v426, 0
      %v449 = vsel %vm441, %v427, 0
      %v452 = vsel %vm441, %v428, 0
      %v455 = vsel %vm441, %v429, 0
      %v458 = vsel %vm441, %v430, 0
      %v461 = vsel %vm441, %v431, 0
      %v464 = vsel %vm441, %v432, 0
      %v467 = vsel %vm441, %v433, 0
      %v470 = vsel %vm441, %v434, 0
      %v473 = vsel %vm441, %v435, 0
      %v476 = vsel %vm441, %v436, 0
      %v479 = vsel %vm441, %v437, 0
      %v482 = vsel %vm441, %v438, 0
      %v485 = vsel %vm441, %v439, 0
      %v488 = vsel %vm441, %v440, 0
      %vm490 = vcmask 1041408
      %v492 = vsel %vm490, %v356, 0
      %494 = vmatpush.bf16.msra.mxu0 0
      %495 = vmatpush.bf16.msra.mxu0 0
      %496 = vmatpush.bf16.msra.mxu0 0
      %497 = vmatpush.bf16.msra.mxu0 0
      %498 = vmatpush.bf16.msra.mxu0 0
      %499 = vmatpush.bf16.msra.mxu0 0
      %500 = vmatpush.bf16.msra.mxu0 0
      %501 = vmatpush.bf16.msra.mxu0 %v492
      %502 = vmatmul.bf16.gmra.mxu0 %v443
      %v503 = vpop.f32.mrf.mxu0
      %v504 = vadd.f32 %v359, %v503
      %v505 = vpop.f32.mrf.mxu0
      %v506 = vadd.f32 %v359, %v505
      %507 = vmatmul.bf16.gmra.mxu0 %v446
      %v508 = vpop.f32.mrf.mxu0
      %v509 = vadd.f32 %v359, %v508
      %v510 = vpop.f32.mrf.mxu0
      %v511 = vadd.f32 %v359, %v510
      %512 = vmatmul.bf16.gmra.mxu0 %v449
      %v513 = vpop.f32.mrf.mxu0
      %v514 = vadd.f32 %v359, %v513
      %v515 = vpop.f32.mrf.mxu0
      %v516 = vadd.f32 %v359, %v515
      %517 = vmatmul.bf16.gmra.mxu0 %v452
      %v518 = vpop.f32.mrf.mxu0
      %v519 = vadd.f32 %v359, %v518
      %v520 = vpop.f32.mrf.mxu0
      %v521 = vadd.f32 %v359, %v520
      %522 = vmatmul.bf16.gmra.mxu0 %v455
      %v523 = vpop.f32.mrf.mxu0
      %v524 = vadd.f32 %v359, %v523
      %v525 = vpop.f32.mrf.mxu0
      %v526 = vadd.f32 %v359, %v525
      %527 = vmatmul.bf16.gmra.mxu0 %v458
      %v528 = vpop.f32.mrf.mxu0
      %v529 = vadd.f32 %v359, %v528
      %v530 = vpop.f32.mrf.mxu0
      %v531 = vadd.f32 %v359, %v530
      %532 = vmatmul.bf16.gmra.mxu0 %v461
      %v533 = vpop.f32.mrf.mxu0
      %v534 = vadd.f32 %v359, %v533
      %v535 = vpop.f32.mrf.mxu0
      %v536 = vadd.f32 %v359, %v535
      %537 = vmatmul.bf16.gmra.mxu0 %v464
      %v538 = vpop.f32.mrf.mxu0
      %v539 = vadd.f32 %v359, %v538
      %v540 = vpop.f32.mrf.mxu0
      %v541 = vadd.f32 %v359, %v540
      %542 = vmatmul.bf16.gmra.mxu0 %v467
      %v543 = vpop.f32.mrf.mxu0
      %v544 = vadd.f32 %v359, %v543
      %v545 = vpop.f32.mrf.mxu0
      %v546 = vadd.f32 %v359, %v545
      %547 = vmatmul.bf16.gmra.mxu0 %v470
      %v548 = vpop.f32.mrf.mxu0
      %v549 = vadd.f32 %v359, %v548
      %v550 = vpop.f32.mrf.mxu0
      %v551 = vadd.f32 %v359, %v550
      %552 = vmatmul.bf16.gmra.mxu0 %v473
      %v553 = vpop.f32.mrf.mxu0
      %v554 = vadd.f32 %v359, %v553
      %v555 = vpop.f32.mrf.mxu0
      %v556 = vadd.f32 %v359, %v555
      %557 = vmatmul.bf16.gmra.mxu0 %v476
      %v558 = vpop.f32.mrf.mxu0
      %v559 = vadd.f32 %v359, %v558
      %v560 = vpop.f32.mrf.mxu0
      %v561 = vadd.f32 %v359, %v560
      %562 = vmatmul.bf16.gmra.mxu0 %v479
      %v563 = vpop.f32.mrf.mxu0
      %v564 = vadd.f32 %v359, %v563
      %v565 = vpop.f32.mrf.mxu0
      %v566 = vadd.f32 %v359, %v565
      %567 = vmatmul.bf16.gmra.mxu0 %v482
      %v568 = vpop.f32.mrf.mxu0
      %v569 = vadd.f32 %v359, %v568
      %v570 = vpop.f32.mrf.mxu0
      %v571 = vadd.f32 %v359, %v570
      %572 = vmatmul.bf16.gmra.mxu0 %v485
      %v573 = vpop.f32.mrf.mxu0
      %v574 = vadd.f32 %v359, %v573
      %v575 = vpop.f32.mrf.mxu0
      %v576 = vadd.f32 %v359, %v575
      %577 = vmatmul.bf16.gmra.mxu0 %v488
      %v578 = vpop.f32.mrf.mxu0
      %v579 = vadd.f32 %v359, %v578
      %v580 = vpop.f32.mrf.mxu0
      %v581 = vadd.f32 %v359, %v580
      %582 = vdwg.mxu0
      %v583 = vmax.f32 %v504, 0.0
      %v584 = vmax.f32 %v506, 0.0
      %v585 = vmax.f32 %v509, 0.0
      %v586 = vmax.f32 %v511, 0.0
      %v587 = vmax.f32 %v514, 0.0
      %v588 = vmax.f32 %v516, 0.0
      %v589 = vmax.f32 %v519, 0.0
      %v590 = vmax.f32 %v521, 0.0
      %v591 = vmax.f32 %v524, 0.0
      %v592 = vmax.f32 %v526, 0.0
      %v593 = vmax.f32 %v529, 0.0
      %v594 = vmax.f32 %v531, 0.0
      %v595 = vmax.f32 %v534, 0.0
      %v596 = vmax.f32 %v536, 0.0
      %v597 = vmax.f32 %v539, 0.0
      %v598 = vmax.f32 %v541, 0.0
      %v599 = vmax.f32 %v544, 0.0
      %v600 = vmax.f32 %v546, 0.0
      %v601 = vmax.f32 %v549, 0.0
      %v602 = vmax.f32 %v551, 0.0
      %v603 = vmax.f32 %v554, 0.0
      %v604 = vmax.f32 %v556, 0.0
      %v605 = vmax.f32 %v559, 0.0
      %v606 = vmax.f32 %v561, 0.0
      %v607 = vmax.f32 %v564, 0.0
      %v608 = vmax.f32 %v566, 0.0
      %v609 = vmax.f32 %v569, 0.0
      %v610 = vmax.f32 %v571, 0.0
      %v611 = vmax.f32 %v574, 0.0
      %v612 = vmax.f32 %v576, 0.0
      %v613 = vmax.f32 %v579, 0.0
      %v614 = vmax.f32 %v581, 0.0
      %v615 = vpack.c.bf16 %v584, %v583
      %v616 = vpack.c.bf16 %v586, %v585
      %v617 = vpack.c.bf16 %v588, %v587
      %v618 = vpack.c.bf16 %v590, %v589
      %v619 = vpack.c.bf16 %v592, %v591
      %v620 = vpack.c.bf16 %v594, %v593
      %v621 = vpack.c.bf16 %v596, %v595
      %v622 = vpack.c.bf16 %v598, %v597
      %v623 = vpack.c.bf16 %v600, %v599
      %v624 = vpack.c.bf16 %v602, %v601
      %v625 = vpack.c.bf16 %v604, %v603
      %v626 = vpack.c.bf16 %v606, %v605
      %v627 = vpack.c.bf16 %v608, %v607
      %v628 = vpack.c.bf16 %v610, %v609
      %v629 = vpack.c.bf16 %v612, %v611
      %v630 = vpack.c.bf16 %v614, %v613
      %v631 = vld [vmem:[%s3] sm:$0xf]
      %v632 = vld [vmem:[%s3 + $0x4] sm:$0xf]
      %v633 = vld [vmem:[%s3 + $0x8] sm:$0xf]
      %v634 = vld [vmem:[%s3 + $0xc] sm:$0xf]
      %v635 = vld [vmem:[%s3 + $0x10] sm:$0xf]
      %v636 = vld [vmem:[%s3 + $0x14] sm:$0xf]
      %v637 = vld [vmem:[%s3 + $0x18] sm:$0xf]
      %v638 = vld [vmem:[%s3 + $0x1c] sm:$0xf]
      %v639 = vld [vmem:[%s3 + $0x20] sm:$0xf]
      %v640 = vld [vmem:[%s3 + $0x24] sm:$0xf]
      %v641 = vld [vmem:[%s3 + $0x28] sm:$0xf]
      %v642 = vld [vmem:[%s3 + $0x2c] sm:$0xf]
      %v643 = vld [vmem:[%s3 + $0x30] sm:$0xf]
      %v644 = vld [vmem:[%s3 + $0x34] sm:$0xf]
      %v645 = vld [vmem:[%s3 + $0x38] sm:$0xf]
      %v646 = vld [vmem:[%s3 + $0x3c] sm:$0xf]
      %v647 = vld [vmem:[%s4] sm:$0x1]
      %v649 = vperm.slane %v647, 0
      %v667 = vunpack.c.l.b16 %v631
      %v668 = vunpack.c.l.b16 %v632
      %v669 = vunpack.c.l.b16 %v633
      %v670 = vunpack.c.l.b16 %v634
      %v671 = vunpack.c.l.b16 %v635
      %v672 = vunpack.c.l.b16 %v636
      %v673 = vunpack.c.l.b16 %v637
      %v674 = vunpack.c.l.b16 %v638
      %v675 = vunpack.c.l.b16 %v639
      %v676 = vunpack.c.l.b16 %v640
      %v677 = vunpack.c.l.b16 %v641
      %v678 = vunpack.c.l.b16 %v642
      %v679 = vunpack.c.l.b16 %v643
      %v680 = vunpack.c.l.b16 %v644
      %v681 = vunpack.c.l.b16 %v645
      %v682 = vunpack.c.l.b16 %v646
      %v683 = vpack.c.b16 %v668, %v667
      %v684 = vpack.c.b16 %v670, %v669
      %v685 = vpack.c.b16 %v672, %v671
      %v686 = vpack.c.b16 %v674, %v673
      %v687 = vpack.c.b16 %v676, %v675
      %v688 = vpack.c.b16 %v678, %v677
      %v689 = vpack.c.b16 %v680, %v679
      %v690 = vpack.c.b16 %v682, %v681
      %699 = vmatpush.bf16.msra.mxu0 %v690
      %700 = vmatpush.bf16.msra.mxu0 %v689
      %701 = vmatpush.bf16.msra.mxu0 %v688
      %702 = vmatpush.bf16.msra.mxu0 %v687
      %703 = vmatpush.bf16.msra.mxu0 %v686
      %704 = vmatpush.bf16.msra.mxu0 %v685
      %705 = vmatpush.bf16.msra.mxu0 %v684
      %706 = vmatpush.bf16.msra.mxu0 %v683
      %707 = vmatmul.bf16.gmra.mxu0 %v615
      %v708 = vpop.f32.mrf.mxu0
      %v709 = vadd.f32 %v649, %v708
      %v710 = vpop.f32.mrf.mxu0
      %v711 = vadd.f32 %v649, %v710
      %712 = vmatmul.bf16.gmra.mxu0 %v616
      %v713 = vpop.f32.mrf.mxu0
      %v714 = vadd.f32 %v649, %v713
      %v715 = vpop.f32.mrf.mxu0
      %v716 = vadd.f32 %v649, %v715
      %717 = vmatmul.bf16.gmra.mxu0 %v617
      %v718 = vpop.f32.mrf.mxu0
      %v719 = vadd.f32 %v649, %v718
      %v720 = vpop.f32.mrf.mxu0
      %v721 = vadd.f32 %v649, %v720
      %722 = vmatmul.bf16.gmra.mxu0 %v618
      %v723 = vpop.f32.mrf.mxu0
      %v724 = vadd.f32 %v649, %v723
      %v725 = vpop.f32.mrf.mxu0
      %v726 = vadd.f32 %v649, %v725
      %727 = vmatmul.bf16.gmra.mxu0 %v619
      %v728 = vpop.f32.mrf.mxu0
      %v729 = vadd.f32 %v649, %v728
      %v730 = vpop.f32.mrf.mxu0
      %v731 = vadd.f32 %v649, %v730
      %732 = vmatmul.bf16.gmra.mxu0 %v620
      %v733 = vpop.f32.mrf.mxu0
      %v734 = vadd.f32 %v649, %v733
      %v735 = vpop.f32.mrf.mxu0
      %v736 = vadd.f32 %v649, %v735
      %737 = vmatmul.bf16.gmra.mxu0 %v621
      %v738 = vpop.f32.mrf.mxu0
      %v739 = vadd.f32 %v649, %v738
      %v740 = vpop.f32.mrf.mxu0
      %v741 = vadd.f32 %v649, %v740
      %742 = vmatmul.bf16.gmra.mxu0 %v622
      %v743 = vpop.f32.mrf.mxu0
      %v744 = vadd.f32 %v649, %v743
      %v745 = vpop.f32.mrf.mxu0
      %v746 = vadd.f32 %v649, %v745
      %747 = vmatmul.bf16.gmra.mxu0 %v623
      %v748 = vpop.f32.mrf.mxu0
      %v749 = vadd.f32 %v649, %v748
      %v750 = vpop.f32.mrf.mxu0
      %v751 = vadd.f32 %v649, %v750
      %752 = vmatmul.bf16.gmra.mxu0 %v624
      %v753 = vpop.f32.mrf.mxu0
      %v754 = vadd.f32 %v649, %v753
      %v755 = vpop.f32.mrf.mxu0
      %v756 = vadd.f32 %v649, %v755
      %757 = vmatmul.bf16.gmra.mxu0 %v625
      %v758 = vpop.f32.mrf.mxu0
      %v759 = vadd.f32 %v649, %v758
      %v760 = vpop.f32.mrf.mxu0
      %v761 = vadd.f32 %v649, %v760
      %762 = vmatmul.bf16.gmra.mxu0 %v626
      %v763 = vpop.f32.mrf.mxu0
      %v764 = vadd.f32 %v649, %v763
      %v765 = vpop.f32.mrf.mxu0
      %v766 = vadd.f32 %v649, %v765
      %767 = vmatmul.bf16.gmra.mxu0 %v627
      %v768 = vpop.f32.mrf.mxu0
      %v769 = vadd.f32 %v649, %v768
      %v770 = vpop.f32.mrf.mxu0
      %v771 = vadd.f32 %v649, %v770
      %772 = vmatmul.bf16.gmra.mxu0 %v628
      %v773 = vpop.f32.mrf.mxu0
      %v774 = vadd.f32 %v649, %v773
      %v775 = vpop.f32.mrf.mxu0
      %v776 = vadd.f32 %v649, %v775
      %777 = vmatmul.bf16.gmra.mxu0 %v629
      %v778 = vpop.f32.mrf.mxu0
      %v779 = vadd.f32 %v649, %v778
      %v780 = vpop.f32.mrf.mxu0
      %v781 = vadd.f32 %v649, %v780
      %782 = vmatmul.bf16.gmra.mxu0 %v630
      %v783 = vpop.f32.mrf.mxu0
      %v784 = vadd.f32 %v649, %v783
      %v785 = vpop.f32.mrf.mxu0
      %v786 = vadd.f32 %v649, %v785
      %787 = vdwg.mxu0
      %v788 = vmax.f32 %v709, 0.0
      %v789 = vmax.f32 %v711, 0.0
      %v790 = vmax.f32 %v714, 0.0
      %v791 = vmax.f32 %v716, 0.0
      %v792 = vmax.f32 %v719, 0.0
      %v793 = vmax.f32 %v721, 0.0
      %v794 = vmax.f32 %v724, 0.0
      %v795 = vmax.f32 %v726, 0.0
      %v796 = vmax.f32 %v729, 0.0
      %v797 = vmax.f32 %v731, 0.0
      %v798 = vmax.f32 %v734, 0.0
      %v799 = vmax.f32 %v736, 0.0
      %v800 = vmax.f32 %v739, 0.0
      %v801 = vmax.f32 %v741, 0.0
      %v802 = vmax.f32 %v744, 0.0
      %v803 = vmax.f32 %v746, 0.0
      %v804 = vmax.f32 %v749, 0.0
      %v805 = vmax.f32 %v751, 0.0
      %v806 = vmax.f32 %v754, 0.0
      %v807 = vmax.f32 %v756, 0.0
      %v808 = vmax.f32 %v759, 0.0
      %v809 = vmax.f32 %v761, 0.0
      %v810 = vmax.f32 %v764, 0.0
      %v811 = vmax.f32 %v766, 0.0
      %v812 = vmax.f32 %v769, 0.0
      %v813 = vmax.f32 %v771, 0.0
      %v814 = vmax.f32 %v774, 0.0
      %v815 = vmax.f32 %v776, 0.0
      %v816 = vmax.f32 %v779, 0.0
      %v817 = vmax.f32 %v781, 0.0
      %v818 = vmax.f32 %v784, 0.0
      %v819 = vmax.f32 %v786, 0.0
      %v820 = vpack.c.bf16 %v789, %v788
      %v821 = vpack.c.bf16 %v791, %v790
      %v822 = vpack.c.bf16 %v793, %v792
      %v823 = vpack.c.bf16 %v795, %v794
      %v824 = vpack.c.bf16 %v797, %v796
      %v825 = vpack.c.bf16 %v799, %v798
      %v826 = vpack.c.bf16 %v801, %v800
      %v827 = vpack.c.bf16 %v803, %v802
      %v828 = vpack.c.bf16 %v805, %v804
      %v829 = vpack.c.bf16 %v807, %v806
      %v830 = vpack.c.bf16 %v809, %v808
      %v831 = vpack.c.bf16 %v811, %v810
      %v832 = vpack.c.bf16 %v813, %v812
      %v833 = vpack.c.bf16 %v815, %v814
      %v834 = vpack.c.bf16 %v817, %v816
      %v835 = vpack.c.bf16 %v819, %v818
      %v836 = vld [vmem:[%s5] sm:$0xf]
      %v837 = vld [vmem:[%s5 + $0x4] sm:$0xf]
      %v838 = vld [vmem:[%s5 + $0x8] sm:$0xf]
      %v839 = vld [vmem:[%s5 + $0xc] sm:$0xf]
      %v840 = vld [vmem:[%s5 + $0x10] sm:$0xf]
      %v841 = vld [vmem:[%s5 + $0x14] sm:$0xf]
      %v842 = vld [vmem:[%s5 + $0x18] sm:$0xf]
      %v843 = vld [vmem:[%s5 + $0x1c] sm:$0xf]
      %v844 = vld [vmem:[%s5 + $0x20] sm:$0xf]
      %v845 = vld [vmem:[%s5 + $0x24] sm:$0xf]
      %v846 = vld [vmem:[%s5 + $0x28] sm:$0xf]
      %v847 = vld [vmem:[%s5 + $0x2c] sm:$0xf]
      %v848 = vld [vmem:[%s5 + $0x30] sm:$0xf]
      %v849 = vld [vmem:[%s5 + $0x34] sm:$0xf]
      %v850 = vld [vmem:[%s5 + $0x38] sm:$0xf]
      %v851 = vld [vmem:[%s5 + $0x3c] sm:$0xf]
      %v852 = vld [vmem:[%s6] sm:$0x1]
      %v854 = vperm.slane %v852, 0
      %v872 = vunpack.c.l.b16 %v836
      %v873 = vunpack.c.l.b16 %v837
      %v874 = vunpack.c.l.b16 %v838
      %v875 = vunpack.c.l.b16 %v839
      %v876 = vunpack.c.l.b16 %v840
      %v877 = vunpack.c.l.b16 %v841
      %v878 = vunpack.c.l.b16 %v842
      %v879 = vunpack.c.l.b16 %v843
      %v880 = vunpack.c.l.b16 %v844
      %v881 = vunpack.c.l.b16 %v845
      %v882 = vunpack.c.l.b16 %v846
      %v883 = vunpack.c.l.b16 %v847
      %v884 = vunpack.c.l.b16 %v848
      %v885 = vunpack.c.l.b16 %v849
      %v886 = vunpack.c.l.b16 %v850
      %v887 = vunpack.c.l.b16 %v851
      %v888 = vpack.c.b16 %v873, %v872
      %v889 = vpack.c.b16 %v875, %v874
      %v890 = vpack.c.b16 %v877, %v876
      %v891 = vpack.c.b16 %v879, %v878
      %v892 = vpack.c.b16 %v881, %v880
      %v893 = vpack.c.b16 %v883, %v882
      %v894 = vpack.c.b16 %v885, %v884
      %v895 = vpack.c.b16 %v887, %v886
      %904 = vmatpush.bf16.msra.mxu0 %v895
      %905 = vmatpush.bf16.msra.mxu0 %v894
      %906 = vmatpush.bf16.msra.mxu0 %v893
      %907 = vmatpush.bf16.msra.mxu0 %v892
      %908 = vmatpush.bf16.msra.mxu0 %v891
      %909 = vmatpush.bf16.msra.mxu0 %v890
      %910 = vmatpush.bf16.msra.mxu0 %v889
      %911 = vmatpush.bf16.msra.mxu0 %v888
      %912 = vmatmul.bf16.gmra.mxu0 %v820
      %v913 = vpop.f32.mrf.mxu0
      %v914 = vadd.f32 %v854, %v913
      %v915 = vpop.f32.mrf.mxu0
      %v916 = vadd.f32 %v854, %v915
      %917 = vmatmul.bf16.gmra.mxu0 %v821
      %v918 = vpop.f32.mrf.mxu0
      %v919 = vadd.f32 %v854, %v918
      %v920 = vpop.f32.mrf.mxu0
      %v921 = vadd.f32 %v854, %v920
      %922 = vmatmul.bf16.gmra.mxu0 %v822
      %v923 = vpop.f32.mrf.mxu0
      %v924 = vadd.f32 %v854, %v923
      %v925 = vpop.f32.mrf.mxu0
      %v926 = vadd.f32 %v854, %v925
      %927 = vmatmul.bf16.gmra.mxu0 %v823
      %v928 = vpop.f32.mrf.mxu0
      %v929 = vadd.f32 %v854, %v928
      %v930 = vpop.f32.mrf.mxu0
      %v931 = vadd.f32 %v854, %v930
      %932 = vmatmul.bf16.gmra.mxu0 %v824
      %v933 = vpop.f32.mrf.mxu0
      %v934 = vadd.f32 %v854, %v933
      %v935 = vpop.f32.mrf.mxu0
      %v936 = vadd.f32 %v854, %v935
      %937 = vmatmul.bf16.gmra.mxu0 %v825
      %v938 = vpop.f32.mrf.mxu0
      %v939 = vadd.f32 %v854, %v938
      %v940 = vpop.f32.mrf.mxu0
      %v941 = vadd.f32 %v854, %v940
      %942 = vmatmul.bf16.gmra.mxu0 %v826
      %v943 = vpop.f32.mrf.mxu0
      %v944 = vadd.f32 %v854, %v943
      %v945 = vpop.f32.mrf.mxu0
      %v946 = vadd.f32 %v854, %v945
      %947 = vmatmul.bf16.gmra.mxu0 %v827
      %v948 = vpop.f32.mrf.mxu0
      %v949 = vadd.f32 %v854, %v948
      %v950 = vpop.f32.mrf.mxu0
      %v951 = vadd.f32 %v854, %v950
      %952 = vmatmul.bf16.gmra.mxu0 %v828
      %v953 = vpop.f32.mrf.mxu0
      %v954 = vadd.f32 %v854, %v953
      %v955 = vpop.f32.mrf.mxu0
      %v956 = vadd.f32 %v854, %v955
      %957 = vmatmul.bf16.gmra.mxu0 %v829
      %v958 = vpop.f32.mrf.mxu0
      %v959 = vadd.f32 %v854, %v958
      %v960 = vpop.f32.mrf.mxu0
      %v961 = vadd.f32 %v854, %v960
      %962 = vmatmul.bf16.gmra.mxu0 %v830
      %v963 = vpop.f32.mrf.mxu0
      %v964 = vadd.f32 %v854, %v963
      %v965 = vpop.f32.mrf.mxu0
      %v966 = vadd.f32 %v854, %v965
      %967 = vmatmul.bf16.gmra.mxu0 %v831
      %v968 = vpop.f32.mrf.mxu0
      %v969 = vadd.f32 %v854, %v968
      %v970 = vpop.f32.mrf.mxu0
      %v971 = vadd.f32 %v854, %v970
      %972 = vmatmul.bf16.gmra.mxu0 %v832
      %v973 = vpop.f32.mrf.mxu0
      %v974 = vadd.f32 %v854, %v973
      %v975 = vpop.f32.mrf.mxu0
      %v976 = vadd.f32 %v854, %v975
      %977 = vmatmul.bf16.gmra.mxu0 %v833
      %v978 = vpop.f32.mrf.mxu0
      %v979 = vadd.f32 %v854, %v978
      %v980 = vpop.f32.mrf.mxu0
      %v981 = vadd.f32 %v854, %v980
      %982 = vmatmul.bf16.gmra.mxu0 %v834
      %v983 = vpop.f32.mrf.mxu0
      %v984 = vadd.f32 %v854, %v983
      %v985 = vpop.f32.mrf.mxu0
      %v986 = vadd.f32 %v854, %v985
      %987 = vmatmul.bf16.gmra.mxu0 %v835
      %v988 = vpop.f32.mrf.mxu0
      %v989 = vadd.f32 %v854, %v988
      %v990 = vpop.f32.mrf.mxu0
      %v991 = vadd.f32 %v854, %v990
      %992 = vdwg.mxu0
      %993 = vst [vmem:[%s315] sm:$0xff] %v914
      %994 = vst [vmem:[%s315 + $0x8] sm:$0xff] %v916
      %995 = vst [vmem:[%s315 + $0x10] sm:$0xff] %v919
      %996 = vst [vmem:[%s315 + $0x18] sm:$0xff] %v921
      %997 = vst [vmem:[%s315 + $0x20] sm:$0xff] %v924
      %998 = vst [vmem:[%s315 + $0x28] sm:$0xff] %v926
      %999 = vst [vmem:[%s315 + $0x30] sm:$0xff] %v929
      %1000 = vst [vmem:[%s315 + $0x38] sm:$0xff] %v931
      %1001 = vst [vmem:[%s315 + $0x40] sm:$0xff] %v934
      %1002 = vst [vmem:[%s315 + $0x48] sm:$0xff] %v936
      %1003 = vst [vmem:[%s315 + $0x50] sm:$0xff] %v939
      %1004 = vst [vmem:[%s315 + $0x58] sm:$0xff] %v941
      %1005 = vst [vmem:[%s315 + $0x60] sm:$0xff] %v944
      %1006 = vst [vmem:[%s315 + $0x68] sm:$0xff] %v946
      %1007 = vst [vmem:[%s315 + $0x70] sm:$0xff] %v949
      %1008 = vst [vmem:[%s315 + $0x78] sm:$0xff] %v951
      %1009 = vst [vmem:[%s315 + $0x80] sm:$0xff] %v954
      %1010 = vst [vmem:[%s315 + $0x88] sm:$0xff] %v956
      %1011 = vst [vmem:[%s315 + $0x90] sm:$0xff] %v959
      %1012 = vst [vmem:[%s315 + $0x98] sm:$0xff] %v961
      %1013 = vst [vmem:[%s315 + $0xa0] sm:$0xff] %v964
      %1014 = vst [vmem:[%s315 + $0xa8] sm:$0xff] %v966
      %1015 = vst [vmem:[%s315 + $0xb0] sm:$0xff] %v969
      %1016 = vst [vmem:[%s315 + $0xb8] sm:$0xff] %v971
      %1017 = vst [vmem:[%s315 + $0xc0] sm:$0xff] %v974
      %1018 = vst [vmem:[%s315 + $0xc8] sm:$0xff] %v976
      %1019 = vst [vmem:[%s315 + $0xd0] sm:$0xff] %v979
      %1020 = vst [vmem:[%s315 + $0xd8] sm:$0xff] %v981
      %1021 = vst [vmem:[%s315 + $0xe0] sm:$0xff] %v984
      %1022 = vst [vmem:[%s315 + $0xe8] sm:$0xff] %v986
      %1023 = vst [vmem:[%s315 + $0xf0] sm:$0xff] %v989
      %1024 = vst [vmem:[%s315 + $0xf8] sm:$0xff] %v991
      %vm1025 = vcmask 15360
      %v1026 = vsel %vm1025, %v914, -inf
      %1027 = vmax.xlane.f32.xlu0 %v1026
      %v1028 = vpop.xlane.xlu0 %1027
      %v1029 = vsel %vm1025, %v916, -inf
      %1030 = vmax.xlane.f32.xlu0 %v1029
      %v1031 = vpop.xlane.xlu0 %1030
      %v1032 = vsel %vm1025, %v919, -inf
      %1033 = vmax.xlane.f32.xlu0 %v1032
      %v1034 = vpop.xlane.xlu0 %1033
      %v1035 = vsel %vm1025, %v921, -inf
      %1036 = vmax.xlane.f32.xlu0 %v1035
      %v1037 = vpop.xlane.xlu0 %1036
      %v1038 = vsel %vm1025, %v924, -inf
      %1039 = vmax.xlane.f32.xlu0 %v1038
      %v1040 = vpop.xlane.xlu0 %1039
      %v1041 = vsel %vm1025, %v926, -inf
      %1042 = vmax.xlane.f32.xlu0 %v1041
      %v1043 = vpop.xlane.xlu0 %1042
      %v1044 = vsel %vm1025, %v929, -inf
      %1045 = vmax.xlane.f32.xlu0 %v1044
      %v1046 = vpop.xlane.xlu0 %1045
      %v1047 = vsel %vm1025, %v931, -inf
      %1048 = vmax.xlane.f32.xlu0 %v1047
      %v1049 = vpop.xlane.xlu0 %1048
      %v1050 = vsel %vm1025, %v934, -inf
      %1051 = vmax.xlane.f32.xlu0 %v1050
      %v1052 = vpop.xlane.xlu0 %1051
      %v1053 = vsel %vm1025, %v936, -inf
      %1054 = vmax.xlane.f32.xlu0 %v1053
      %v1055 = vpop.xlane.xlu0 %1054
      %v1056 = vsel %vm1025, %v939, -inf
      %1057 = vmax.xlane.f32.xlu0 %v1056
      %v1058 = vpop.xlane.xlu0 %1057
      %v1059 = vsel %vm1025, %v941, -inf
      %1060 = vmax.xlane.f32.xlu0 %v1059
      %v1061 = vpop.xlane.xlu0 %1060
      %v1062 = vsel %vm1025, %v944, -inf
      %1063 = vmax.xlane.f32.xlu0 %v1062
      %v1064 = vpop.xlane.xlu0 %1063
      %v1065 = vsel %vm1025, %v946, -inf
      %1066 = vmax.xlane.f32.xlu0 %v1065
      %v1067 = vpop.xlane.xlu0 %1066
      %v1068 = vsel %vm1025, %v949, -inf
      %1069 = vmax.xlane.f32.xlu0 %v1068
      %v1070 = vpop.xlane.xlu0 %1069
      %v1071 = vsel %vm1025, %v951, -inf
      %1072 = vmax.xlane.f32.xlu0 %v1071
      %v1073 = vpop.xlane.xlu0 %1072
      %v1074 = vsel %vm1025, %v954, -inf
      %1075 = vmax.xlane.f32.xlu0 %v1074
      %v1076 = vpop.xlane.xlu0 %1075
      %v1077 = vsel %vm1025, %v956, -inf
      %1078 = vmax.xlane.f32.xlu0 %v1077
      %v1079 = vpop.xlane.xlu0 %1078
      %v1080 = vsel %vm1025, %v959, -inf
      %1081 = vmax.xlane.f32.xlu0 %v1080
      %v1082 = vpop.xlane.xlu0 %1081
      %v1083 = vsel %vm1025, %v961, -inf
      %1084 = vmax.xlane.f32.xlu0 %v1083
      %v1085 = vpop.xlane.xlu0 %1084
      %v1086 = vsel %vm1025, %v964, -inf
      %1087 = vmax.xlane.f32.xlu0 %v1086
      %v1088 = vpop.xlane.xlu0 %1087
      %v1089 = vsel %vm1025, %v966, -inf
      %1090 = vmax.xlane.f32.xlu0 %v1089
      %v1091 = vpop.xlane.xlu0 %1090
      %v1092 = vsel %vm1025, %v969, -inf
      %1093 = vmax.xlane.f32.xlu0 %v1092
      %v1094 = vpop.xlane.xlu0 %1093
      %v1095 = vsel %vm1025, %v971, -inf
      %1096 = vmax.xlane.f32.xlu0 %v1095
      %v1097 = vpop.xlane.xlu0 %1096
      %v1098 = vsel %vm1025, %v974, -inf
      %1099 = vmax.xlane.f32.xlu0 %v1098
      %v1100 = vpop.xlane.xlu0 %1099
      %v1101 = vsel %vm1025, %v976, -inf
      %1102 = vmax.xlane.f32.xlu0 %v1101
      %v1103 = vpop.xlane.xlu0 %1102
      %v1104 = vsel %vm1025, %v979, -inf
      %1105 = vmax.xlane.f32.xlu0 %v1104
      %v1106 = vpop.xlane.xlu0 %1105
      %v1107 = vsel %vm1025, %v981, -inf
      %1108 = vmax.xlane.f32.xlu0 %v1107
      %v1109 = vpop.xlane.xlu0 %1108
      %v1110 = vsel %vm1025, %v984, -inf
      %1111 = vmax.xlane.f32.xlu0 %v1110
      %v1112 = vpop.xlane.xlu0 %1111
      %v1113 = vsel %vm1025, %v986, -inf
      %1114 = vmax.xlane.f32.xlu0 %v1113
      %v1115 = vpop.xlane.xlu0 %1114
      %v1116 = vsel %vm1025, %v989, -inf
      %1117 = vmax.xlane.f32.xlu0 %v1116
      %v1118 = vpop.xlane.xlu0 %1117
      %v1119 = vsel %vm1025, %v991, -inf
      %1120 = vmax.xlane.f32.xlu0 %v1119
      %v1121 = vpop.xlane.xlu0 %1120
      %v1122 = vlaneseq
      %v1123 = vand.u32 %v1122, 127
      %vm1124 = vcmp.eq.f32.partialorder %v914, %v1028
      %vm1125 = vcmp.eq.f32.partialorder %v916, %v1031
      %vm1126 = vcmp.eq.f32.partialorder %v919, %v1034
      %vm1127 = vcmp.eq.f32.partialorder %v921, %v1037
      %vm1128 = vcmp.eq.f32.partialorder %v924, %v1040
      %vm1129 = vcmp.eq.f32.partialorder %v926, %v1043
      %vm1130 = vcmp.eq.f32.partialorder %v929, %v1046
      %vm1131 = vcmp.eq.f32.partialorder %v931, %v1049
      %vm1132 = vcmp.eq.f32.partialorder %v934, %v1052
      %vm1133 = vcmp.eq.f32.partialorder %v936, %v1055
      %vm1134 = vcmp.eq.f32.partialorder %v939, %v1058
      %vm1135 = vcmp.eq.f32.partialorder %v941, %v1061
      %vm1136 = vcmp.eq.f32.partialorder %v944, %v1064
      %vm1137 = vcmp.eq.f32.partialorder %v946, %v1067
      %vm1138 = vcmp.eq.f32.partialorder %v949, %v1070
      %vm1139 = vcmp.eq.f32.partialorder %v951, %v1073
      %vm1140 = vcmp.eq.f32.partialorder %v954, %v1076
      %vm1141 = vcmp.eq.f32.partialorder %v956, %v1079
      %vm1142 = vcmp.eq.f32.partialorder %v959, %v1082
      %vm1143 = vcmp.eq.f32.partialorder %v961, %v1085
      %vm1144 = vcmp.eq.f32.partialorder %v964, %v1088
      %vm1145 = vcmp.eq.f32.partialorder %v966, %v1091
      %vm1146 = vcmp.eq.f32.partialorder %v969, %v1094
      %vm1147 = vcmp.eq.f32.partialorder %v971, %v1097
      %vm1148 = vcmp.eq.f32.partialorder %v974, %v1100
      %vm1149 = vcmp.eq.f32.partialorder %v976, %v1103
      %vm1150 = vcmp.eq.f32.partialorder %v979, %v1106
      %vm1151 = vcmp.eq.f32.partialorder %v981, %v1109
      %vm1152 = vcmp.eq.f32.partialorder %v984, %v1112
      %vm1153 = vcmp.eq.f32.partialorder %v986, %v1115
      %vm1154 = vcmp.eq.f32.partialorder %v989, %v1118
      %vm1155 = vcmp.eq.f32.partialorder %v991, %v1121
      %v1156 = vsel %vm1124, %v1123, 2
      %v1157 = vsel %vm1125, %v1123, 2
      %v1158 = vsel %vm1126, %v1123, 2
      %v1159 = vsel %vm1127, %v1123, 2
      %v1160 = vsel %vm1128, %v1123, 2
      %v1161 = vsel %vm1129, %v1123, 2
      %v1162 = vsel %vm1130, %v1123, 2
      %v1163 = vsel %vm1131, %v1123, 2
      %v1164 = vsel %vm1132, %v1123, 2
      %v1165 = vsel %vm1133, %v1123, 2
      %v1166 = vsel %vm1134, %v1123, 2
      %v1167 = vsel %vm1135, %v1123, 2
      %v1168 = vsel %vm1136, %v1123, 2
      %v1169 = vsel %vm1137, %v1123, 2
      %v1170 = vsel %vm1138, %v1123, 2
      %v1171 = vsel %vm1139, %v1123, 2
      %v1172 = vsel %vm1140, %v1123, 2
      %v1173 = vsel %vm1141, %v1123, 2
      %v1174 = vsel %vm1142, %v1123, 2
      %v1175 = vsel %vm1143, %v1123, 2
      %v1176 = vsel %vm1144, %v1123, 2
      %v1177 = vsel %vm1145, %v1123, 2
      %v1178 = vsel %vm1146, %v1123, 2
      %v1179 = vsel %vm1147, %v1123, 2
      %v1180 = vsel %vm1148, %v1123, 2
      %v1181 = vsel %vm1149, %v1123, 2
      %v1182 = vsel %vm1150, %v1123, 2
      %v1183 = vsel %vm1151, %v1123, 2
      %v1184 = vsel %vm1152, %v1123, 2
      %v1185 = vsel %vm1153, %v1123, 2
      %v1186 = vsel %vm1154, %v1123, 2
      %v1187 = vsel %vm1155, %v1123, 2
      %v1188 = vsel %vm1025, %v1156, 2147483647
      %v1189 = vand.u32 %v1188, 65535
      %v1190 = vshra.s32 %v1188, 16
      %v1191 = vcvt.s32.f32 %v1189
      %v1192 = vcvt.s32.f32 %v1190
      %1193 = vmin.xlane.f32.xlu0 %v1192
      %v1194 = vpop.xlane.xlu0 %1193
      %vm1195 = vcmp.eq.f32.partialorder %v1192, %v1194
      %v1196 = vsel %vm1195, %v1191, inf
      %1197 = vmin.xlane.f32.xlu0 %v1196
      %v1198 = vpop.xlane.xlu0 %1197
      %v1199 = vcvt.f32.s32 %v1198
      %v1200 = vcvt.f32.s32 %v1194
      %v1201 = vshll.u32 %v1200, 16
      %v1202 = vadd.s32 %v1201, %v1199
      %v1203 = vsel %vm1025, %v1157, 2147483647
      %v1204 = vand.u32 %v1203, 65535
      %v1205 = vshra.s32 %v1203, 16
      %v1206 = vcvt.s32.f32 %v1204
      %v1207 = vcvt.s32.f32 %v1205
      %1208 = vmin.xlane.f32.xlu0 %v1207
      %v1209 = vpop.xlane.xlu0 %1208
      %vm1210 = vcmp.eq.f32.partialorder %v1207, %v1209
      %v1211 = vsel %vm1210, %v1206, inf
      %1212 = vmin.xlane.f32.xlu0 %v1211
      %v1213 = vpop.xlane.xlu0 %1212
      %v1214 = vcvt.f32.s32 %v1213
      %v1215 = vcvt.f32.s32 %v1209
      %v1216 = vshll.u32 %v1215, 16
      %v1217 = vadd.s32 %v1216, %v1214
      %v1218 = vsel %vm1025, %v1158, 2147483647
      %v1219 = vand.u32 %v1218, 65535
      %v1220 = vshra.s32 %v1218, 16
      %v1221 = vcvt.s32.f32 %v1219
      %v1222 = vcvt.s32.f32 %v1220
      %1223 = vmin.xlane.f32.xlu0 %v1222
      %v1224 = vpop.xlane.xlu0 %1223
      %vm1225 = vcmp.eq.f32.partialorder %v1222, %v1224
      %v1226 = vsel %vm1225, %v1221, inf
      %1227 = vmin.xlane.f32.xlu0 %v1226
      %v1228 = vpop.xlane.xlu0 %1227
      %v1229 = vcvt.f32.s32 %v1228
      %v1230 = vcvt.f32.s32 %v1224
      %v1231 = vshll.u32 %v1230, 16
      %v1232 = vadd.s32 %v1231, %v1229
      %v1233 = vsel %vm1025, %v1159, 2147483647
      %v1234 = vand.u32 %v1233, 65535
      %v1235 = vshra.s32 %v1233, 16
      %v1236 = vcvt.s32.f32 %v1234
      %v1237 = vcvt.s32.f32 %v1235
      %1238 = vmin.xlane.f32.xlu0 %v1237
      %v1239 = vpop.xlane.xlu0 %1238
      %vm1240 = vcmp.eq.f32.partialorder %v1237, %v1239
      %v1241 = vsel %vm1240, %v1236, inf
      %1242 = vmin.xlane.f32.xlu0 %v1241
      %v1243 = vpop.xlane.xlu0 %1242
      %v1244 = vcvt.f32.s32 %v1243
      %v1245 = vcvt.f32.s32 %v1239
      %v1246 = vshll.u32 %v1245, 16
      %v1247 = vadd.s32 %v1246, %v1244
      %v1248 = vsel %vm1025, %v1160, 2147483647
      %v1249 = vand.u32 %v1248, 65535
      %v1250 = vshra.s32 %v1248, 16
      %v1251 = vcvt.s32.f32 %v1249
      %v1252 = vcvt.s32.f32 %v1250
      %1253 = vmin.xlane.f32.xlu0 %v1252
      %v1254 = vpop.xlane.xlu0 %1253
      %vm1255 = vcmp.eq.f32.partialorder %v1252, %v1254
      %v1256 = vsel %vm1255, %v1251, inf
      %1257 = vmin.xlane.f32.xlu0 %v1256
      %v1258 = vpop.xlane.xlu0 %1257
      %v1259 = vcvt.f32.s32 %v1258
      %v1260 = vcvt.f32.s32 %v1254
      %v1261 = vshll.u32 %v1260, 16
      %v1262 = vadd.s32 %v1261, %v1259
      %v1263 = vsel %vm1025, %v1161, 2147483647
      %v1264 = vand.u32 %v1263, 65535
      %v1265 = vshra.s32 %v1263, 16
      %v1266 = vcvt.s32.f32 %v1264
      %v1267 = vcvt.s32.f32 %v1265
      %1268 = vmin.xlane.f32.xlu0 %v1267
      %v1269 = vpop.xlane.xlu0 %1268
      %vm1270 = vcmp.eq.f32.partialorder %v1267, %v1269
      %v1271 = vsel %vm1270, %v1266, inf
      %1272 = vmin.xlane.f32.xlu0 %v1271
      %v1273 = vpop.xlane.xlu0 %1272
      %v1274 = vcvt.f32.s32 %v1273
      %v1275 = vcvt.f32.s32 %v1269
      %v1276 = vshll.u32 %v1275, 16
      %v1277 = vadd.s32 %v1276, %v1274
      %v1278 = vsel %vm1025, %v1162, 2147483647
      %v1279 = vand.u32 %v1278, 65535
      %v1280 = vshra.s32 %v1278, 16
      %v1281 = vcvt.s32.f32 %v1279
      %v1282 = vcvt.s32.f32 %v1280
      %1283 = vmin.xlane.f32.xlu0 %v1282
      %v1284 = vpop.xlane.xlu0 %1283
      %vm1285 = vcmp.eq.f32.partialorder %v1282, %v1284
      %v1286 = vsel %vm1285, %v1281, inf
      %1287 = vmin.xlane.f32.xlu0 %v1286
      %v1288 = vpop.xlane.xlu0 %1287
      %v1289 = vcvt.f32.s32 %v1288
      %v1290 = vcvt.f32.s32 %v1284
      %v1291 = vshll.u32 %v1290, 16
      %v1292 = vadd.s32 %v1291, %v1289
      %v1293 = vsel %vm1025, %v1163, 2147483647
      %v1294 = vand.u32 %v1293, 65535
      %v1295 = vshra.s32 %v1293, 16
      %v1296 = vcvt.s32.f32 %v1294
      %v1297 = vcvt.s32.f32 %v1295
      %1298 = vmin.xlane.f32.xlu0 %v1297
      %v1299 = vpop.xlane.xlu0 %1298
      %vm1300 = vcmp.eq.f32.partialorder %v1297, %v1299
      %v1301 = vsel %vm1300, %v1296, inf
      %1302 = vmin.xlane.f32.xlu0 %v1301
      %v1303 = vpop.xlane.xlu0 %1302
      %v1304 = vcvt.f32.s32 %v1303
      %v1305 = vcvt.f32.s32 %v1299
      %v1306 = vshll.u32 %v1305, 16
      %v1307 = vadd.s32 %v1306, %v1304
      %v1308 = vsel %vm1025, %v1164, 2147483647
      %v1309 = vand.u32 %v1308, 65535
      %v1310 = vshra.s32 %v1308, 16
      %v1311 = vcvt.s32.f32 %v1309
      %v1312 = vcvt.s32.f32 %v1310
      %1313 = vmin.xlane.f32.xlu0 %v1312
      %v1314 = vpop.xlane.xlu0 %1313
      %vm1315 = vcmp.eq.f32.partialorder %v1312, %v1314
      %v1316 = vsel %vm1315, %v1311, inf
      %1317 = vmin.xlane.f32.xlu0 %v1316
      %v1318 = vpop.xlane.xlu0 %1317
      %v1319 = vcvt.f32.s32 %v1318
      %v1320 = vcvt.f32.s32 %v1314
      %v1321 = vshll.u32 %v1320, 16
      %v1322 = vadd.s32 %v1321, %v1319
      %v1323 = vsel %vm1025, %v1165, 2147483647
      %v1324 = vand.u32 %v1323, 65535
      %v1325 = vshra.s32 %v1323, 16
      %v1326 = vcvt.s32.f32 %v1324
      %v1327 = vcvt.s32.f32 %v1325
      %1328 = vmin.xlane.f32.xlu0 %v1327
      %v1329 = vpop.xlane.xlu0 %1328
      %vm1330 = vcmp.eq.f32.partialorder %v1327, %v1329
      %v1331 = vsel %vm1330, %v1326, inf
      %1332 = vmin.xlane.f32.xlu0 %v1331
      %v1333 = vpop.xlane.xlu0 %1332
      %v1334 = vcvt.f32.s32 %v1333
      %v1335 = vcvt.f32.s32 %v1329
      %v1336 = vshll.u32 %v1335, 16
      %v1337 = vadd.s32 %v1336, %v1334
      %v1338 = vsel %vm1025, %v1166, 2147483647
      %v1339 = vand.u32 %v1338, 65535
      %v1340 = vshra.s32 %v1338, 16
      %v1341 = vcvt.s32.f32 %v1339
      %v1342 = vcvt.s32.f32 %v1340
      %1343 = vmin.xlane.f32.xlu0 %v1342
      %v1344 = vpop.xlane.xlu0 %1343
      %vm1345 = vcmp.eq.f32.partialorder %v1342, %v1344
      %v1346 = vsel %vm1345, %v1341, inf
      %1347 = vmin.xlane.f32.xlu0 %v1346
      %v1348 = vpop.xlane.xlu0 %1347
      %v1349 = vcvt.f32.s32 %v1348
      %v1350 = vcvt.f32.s32 %v1344
      %v1351 = vshll.u32 %v1350, 16
      %v1352 = vadd.s32 %v1351, %v1349
      %v1353 = vsel %vm1025, %v1167, 2147483647
      %v1354 = vand.u32 %v1353, 65535
      %v1355 = vshra.s32 %v1353, 16
      %v1356 = vcvt.s32.f32 %v1354
      %v1357 = vcvt.s32.f32 %v1355
      %1358 = vmin.xlane.f32.xlu0 %v1357
      %v1359 = vpop.xlane.xlu0 %1358
      %vm1360 = vcmp.eq.f32.partialorder %v1357, %v1359
      %v1361 = vsel %vm1360, %v1356, inf
      %1362 = vmin.xlane.f32.xlu0 %v1361
      %v1363 = vpop.xlane.xlu0 %1362
      %v1364 = vcvt.f32.s32 %v1363
      %v1365 = vcvt.f32.s32 %v1359
      %v1366 = vshll.u32 %v1365, 16
      %v1367 = vadd.s32 %v1366, %v1364
      %v1368 = vsel %vm1025, %v1168, 2147483647
      %v1369 = vand.u32 %v1368, 65535
      %v1370 = vshra.s32 %v1368, 16
      %v1371 = vcvt.s32.f32 %v1369
      %v1372 = vcvt.s32.f32 %v1370
      %1373 = vmin.xlane.f32.xlu0 %v1372
      %v1374 = vpop.xlane.xlu0 %1373
      %vm1375 = vcmp.eq.f32.partialorder %v1372, %v1374
      %v1376 = vsel %vm1375, %v1371, inf
      %1377 = vmin.xlane.f32.xlu0 %v1376
      %v1378 = vpop.xlane.xlu0 %1377
      %v1379 = vcvt.f32.s32 %v1378
      %v1380 = vcvt.f32.s32 %v1374
      %v1381 = vshll.u32 %v1380, 16
      %v1382 = vadd.s32 %v1381, %v1379
      %v1383 = vsel %vm1025, %v1169, 2147483647
      %v1384 = vand.u32 %v1383, 65535
      %v1385 = vshra.s32 %v1383, 16
      %v1386 = vcvt.s32.f32 %v1384
      %v1387 = vcvt.s32.f32 %v1385
      %1388 = vmin.xlane.f32.xlu0 %v1387
      %v1389 = vpop.xlane.xlu0 %1388
      %vm1390 = vcmp.eq.f32.partialorder %v1387, %v1389
      %v1391 = vsel %vm1390, %v1386, inf
      %1392 = vmin.xlane.f32.xlu0 %v1391
      %v1393 = vpop.xlane.xlu0 %1392
      %v1394 = vcvt.f32.s32 %v1393
      %v1395 = vcvt.f32.s32 %v1389
      %v1396 = vshll.u32 %v1395, 16
      %v1397 = vadd.s32 %v1396, %v1394
      %v1398 = vsel %vm1025, %v1170, 2147483647
      %v1399 = vand.u32 %v1398, 65535
      %v1400 = vshra.s32 %v1398, 16
      %v1401 = vcvt.s32.f32 %v1399
      %v1402 = vcvt.s32.f32 %v1400
      %1403 = vmin.xlane.f32.xlu0 %v1402
      %v1404 = vpop.xlane.xlu0 %1403
      %vm1405 = vcmp.eq.f32.partialorder %v1402, %v1404
      %v1406 = vsel %vm1405, %v1401, inf
      %1407 = vmin.xlane.f32.xlu0 %v1406
      %v1408 = vpop.xlane.xlu0 %1407
      %v1409 = vcvt.f32.s32 %v1408
      %v1410 = vcvt.f32.s32 %v1404
      %v1411 = vshll.u32 %v1410, 16
      %v1412 = vadd.s32 %v1411, %v1409
      %v1413 = vsel %vm1025, %v1171, 2147483647
      %v1414 = vand.u32 %v1413, 65535
      %v1415 = vshra.s32 %v1413, 16
      %v1416 = vcvt.s32.f32 %v1414
      %v1417 = vcvt.s32.f32 %v1415
      %1418 = vmin.xlane.f32.xlu0 %v1417
      %v1419 = vpop.xlane.xlu0 %1418
      %vm1420 = vcmp.eq.f32.partialorder %v1417, %v1419
      %v1421 = vsel %vm1420, %v1416, inf
      %1422 = vmin.xlane.f32.xlu0 %v1421
      %v1423 = vpop.xlane.xlu0 %1422
      %v1424 = vcvt.f32.s32 %v1423
      %v1425 = vcvt.f32.s32 %v1419
      %v1426 = vshll.u32 %v1425, 16
      %v1427 = vadd.s32 %v1426, %v1424
      %v1428 = vsel %vm1025, %v1172, 2147483647
      %v1429 = vand.u32 %v1428, 65535
      %v1430 = vshra.s32 %v1428, 16
      %v1431 = vcvt.s32.f32 %v1429
      %v1432 = vcvt.s32.f32 %v1430
      %1433 = vmin.xlane.f32.xlu0 %v1432
      %v1434 = vpop.xlane.xlu0 %1433
      %vm1435 = vcmp.eq.f32.partialorder %v1432, %v1434
      %v1436 = vsel %vm1435, %v1431, inf
      %1437 = vmin.xlane.f32.xlu0 %v1436
      %v1438 = vpop.xlane.xlu0 %1437
      %v1439 = vcvt.f32.s32 %v1438
      %v1440 = vcvt.f32.s32 %v1434
      %v1441 = vshll.u32 %v1440, 16
      %v1442 = vadd.s32 %v1441, %v1439
      %v1443 = vsel %vm1025, %v1173, 2147483647
      %v1444 = vand.u32 %v1443, 65535
      %v1445 = vshra.s32 %v1443, 16
      %v1446 = vcvt.s32.f32 %v1444
      %v1447 = vcvt.s32.f32 %v1445
      %1448 = vmin.xlane.f32.xlu0 %v1447
      %v1449 = vpop.xlane.xlu0 %1448
      %vm1450 = vcmp.eq.f32.partialorder %v1447, %v1449
      %v1451 = vsel %vm1450, %v1446, inf
      %1452 = vmin.xlane.f32.xlu0 %v1451
      %v1453 = vpop.xlane.xlu0 %1452
      %v1454 = vcvt.f32.s32 %v1453
      %v1455 = vcvt.f32.s32 %v1449
      %v1456 = vshll.u32 %v1455, 16
      %v1457 = vadd.s32 %v1456, %v1454
      %v1458 = vsel %vm1025, %v1174, 2147483647
      %v1459 = vand.u32 %v1458, 65535
      %v1460 = vshra.s32 %v1458, 16
      %v1461 = vcvt.s32.f32 %v1459
      %v1462 = vcvt.s32.f32 %v1460
      %1463 = vmin.xlane.f32.xlu0 %v1462
      %v1464 = vpop.xlane.xlu0 %1463
      %vm1465 = vcmp.eq.f32.partialorder %v1462, %v1464
      %v1466 = vsel %vm1465, %v1461, inf
      %1467 = vmin.xlane.f32.xlu0 %v1466
      %v1468 = vpop.xlane.xlu0 %1467
      %v1469 = vcvt.f32.s32 %v1468
      %v1470 = vcvt.f32.s32 %v1464
      %v1471 = vshll.u32 %v1470, 16
      %v1472 = vadd.s32 %v1471, %v1469
      %v1473 = vsel %vm1025, %v1175, 2147483647
      %v1474 = vand.u32 %v1473, 65535
      %v1475 = vshra.s32 %v1473, 16
      %v1476 = vcvt.s32.f32 %v1474
      %v1477 = vcvt.s32.f32 %v1475
      %1478 = vmin.xlane.f32.xlu0 %v1477
      %v1479 = vpop.xlane.xlu0 %1478
      %vm1480 = vcmp.eq.f32.partialorder %v1477, %v1479
      %v1481 = vsel %vm1480, %v1476, inf
      %1482 = vmin.xlane.f32.xlu0 %v1481
      %v1483 = vpop.xlane.xlu0 %1482
      %v1484 = vcvt.f32.s32 %v1483
      %v1485 = vcvt.f32.s32 %v1479
      %v1486 = vshll.u32 %v1485, 16
      %v1487 = vadd.s32 %v1486, %v1484
      %v1488 = vsel %vm1025, %v1176, 2147483647
      %v1489 = vand.u32 %v1488, 65535
      %v1490 = vshra.s32 %v1488, 16
      %v1491 = vcvt.s32.f32 %v1489
      %v1492 = vcvt.s32.f32 %v1490
      %1493 = vmin.xlane.f32.xlu0 %v1492
      %v1494 = vpop.xlane.xlu0 %1493
      %vm1495 = vcmp.eq.f32.partialorder %v1492, %v1494
      %v1496 = vsel %vm1495, %v1491, inf
      %1497 = vmin.xlane.f32.xlu0 %v1496
      %v1498 = vpop.xlane.xlu0 %1497
      %v1499 = vcvt.f32.s32 %v1498
      %v1500 = vcvt.f32.s32 %v1494
      %v1501 = vshll.u32 %v1500, 16
      %v1502 = vadd.s32 %v1501, %v1499
      %v1503 = vsel %vm1025, %v1177, 2147483647
      %v1504 = vand.u32 %v1503, 65535
      %v1505 = vshra.s32 %v1503, 16
      %v1506 = vcvt.s32.f32 %v1504
      %v1507 = vcvt.s32.f32 %v1505
      %1508 = vmin.xlane.f32.xlu0 %v1507
      %v1509 = vpop.xlane.xlu0 %1508
      %vm1510 = vcmp.eq.f32.partialorder %v1507, %v1509
      %v1511 = vsel %vm1510, %v1506, inf
      %1512 = vmin.xlane.f32.xlu0 %v1511
      %v1513 = vpop.xlane.xlu0 %1512
      %v1514 = vcvt.f32.s32 %v1513
      %v1515 = vcvt.f32.s32 %v1509
      %v1516 = vshll.u32 %v1515, 16
      %v1517 = vadd.s32 %v1516, %v1514
      %v1518 = vsel %vm1025, %v1178, 2147483647
      %v1519 = vand.u32 %v1518, 65535
      %v1520 = vshra.s32 %v1518, 16
      %v1521 = vcvt.s32.f32 %v1519
      %v1522 = vcvt.s32.f32 %v1520
      %1523 = vmin.xlane.f32.xlu0 %v1522
      %v1524 = vpop.xlane.xlu0 %1523
      %vm1525 = vcmp.eq.f32.partialorder %v1522, %v1524
      %v1526 = vsel %vm1525, %v1521, inf
      %1527 = vmin.xlane.f32.xlu0 %v1526
      %v1528 = vpop.xlane.xlu0 %1527
      %v1529 = vcvt.f32.s32 %v1528
      %v1530 = vcvt.f32.s32 %v1524
      %v1531 = vshll.u32 %v1530, 16
      %v1532 = vadd.s32 %v1531, %v1529
      %v1533 = vsel %vm1025, %v1179, 2147483647
      %v1534 = vand.u32 %v1533, 65535
      %v1535 = vshra.s32 %v1533, 16
      %v1536 = vcvt.s32.f32 %v1534
      %v1537 = vcvt.s32.f32 %v1535
      %1538 = vmin.xlane.f32.xlu0 %v1537
      %v1539 = vpop.xlane.xlu0 %1538
      %vm1540 = vcmp.eq.f32.partialorder %v1537, %v1539
      %v1541 = vsel %vm1540, %v1536, inf
      %1542 = vmin.xlane.f32.xlu0 %v1541
      %v1543 = vpop.xlane.xlu0 %1542
      %v1544 = vcvt.f32.s32 %v1543
      %v1545 = vcvt.f32.s32 %v1539
      %v1546 = vshll.u32 %v1545, 16
      %v1547 = vadd.s32 %v1546, %v1544
      %v1548 = vsel %vm1025, %v1180, 2147483647
      %v1549 = vand.u32 %v1548, 65535
      %v1550 = vshra.s32 %v1548, 16
      %v1551 = vcvt.s32.f32 %v1549
      %v1552 = vcvt.s32.f32 %v1550
      %1553 = vmin.xlane.f32.xlu0 %v1552
      %v1554 = vpop.xlane.xlu0 %1553
      %vm1555 = vcmp.eq.f32.partialorder %v1552, %v1554
      %v1556 = vsel %vm1555, %v1551, inf
      %1557 = vmin.xlane.f32.xlu0 %v1556
      %v1558 = vpop.xlane.xlu0 %1557
      %v1559 = vcvt.f32.s32 %v1558
      %v1560 = vcvt.f32.s32 %v1554
      %v1561 = vshll.u32 %v1560, 16
      %v1562 = vadd.s32 %v1561, %v1559
      %v1563 = vsel %vm1025, %v1181, 2147483647
      %v1564 = vand.u32 %v1563, 65535
      %v1565 = vshra.s32 %v1563, 16
      %v1566 = vcvt.s32.f32 %v1564
      %v1567 = vcvt.s32.f32 %v1565
      %1568 = vmin.xlane.f32.xlu0 %v1567
      %v1569 = vpop.xlane.xlu0 %1568
      %vm1570 = vcmp.eq.f32.partialorder %v1567, %v1569
      %v1571 = vsel %vm1570, %v1566, inf
      %1572 = vmin.xlane.f32.xlu0 %v1571
      %v1573 = vpop.xlane.xlu0 %1572
      %v1574 = vcvt.f32.s32 %v1573
      %v1575 = vcvt.f32.s32 %v1569
      %v1576 = vshll.u32 %v1575, 16
      %v1577 = vadd.s32 %v1576, %v1574
      %v1578 = vsel %vm1025, %v1182, 2147483647
      %v1579 = vand.u32 %v1578, 65535
      %v1580 = vshra.s32 %v1578, 16
      %v1581 = vcvt.s32.f32 %v1579
      %v1582 = vcvt.s32.f32 %v1580
      %1583 = vmin.xlane.f32.xlu0 %v1582
      %v1584 = vpop.xlane.xlu0 %1583
      %vm1585 = vcmp.eq.f32.partialorder %v1582, %v1584
      %v1586 = vsel %vm1585, %v1581, inf
      %1587 = vmin.xlane.f32.xlu0 %v1586
      %v1588 = vpop.xlane.xlu0 %1587
      %v1589 = vcvt.f32.s32 %v1588
      %v1590 = vcvt.f32.s32 %v1584
      %v1591 = vshll.u32 %v1590, 16
      %v1592 = vadd.s32 %v1591, %v1589
      %v1593 = vsel %vm1025, %v1183, 2147483647
      %v1594 = vand.u32 %v1593, 65535
      %v1595 = vshra.s32 %v1593, 16
      %v1596 = vcvt.s32.f32 %v1594
      %v1597 = vcvt.s32.f32 %v1595
      %1598 = vmin.xlane.f32.xlu0 %v1597
      %v1599 = vpop.xlane.xlu0 %1598
      %vm1600 = vcmp.eq.f32.partialorder %v1597, %v1599
      %v1601 = vsel %vm1600, %v1596, inf
      %1602 = vmin.xlane.f32.xlu0 %v1601
      %v1603 = vpop.xlane.xlu0 %1602
      %v1604 = vcvt.f32.s32 %v1603
      %v1605 = vcvt.f32.s32 %v1599
      %v1606 = vshll.u32 %v1605, 16
      %v1607 = vadd.s32 %v1606, %v1604
      %v1608 = vsel %vm1025, %v1184, 2147483647
      %v1609 = vand.u32 %v1608, 65535
      %v1610 = vshra.s32 %v1608, 16
      %v1611 = vcvt.s32.f32 %v1609
      %v1612 = vcvt.s32.f32 %v1610
      %1613 = vmin.xlane.f32.xlu0 %v1612
      %v1614 = vpop.xlane.xlu0 %1613
      %vm1615 = vcmp.eq.f32.partialorder %v1612, %v1614
      %v1616 = vsel %vm1615, %v1611, inf
      %1617 = vmin.xlane.f32.xlu0 %v1616
      %v1618 = vpop.xlane.xlu0 %1617
      %v1619 = vcvt.f32.s32 %v1618
      %v1620 = vcvt.f32.s32 %v1614
      %v1621 = vshll.u32 %v1620, 16
      %v1622 = vadd.s32 %v1621, %v1619
      %v1623 = vsel %vm1025, %v1185, 2147483647
      %v1624 = vand.u32 %v1623, 65535
      %v1625 = vshra.s32 %v1623, 16
      %v1626 = vcvt.s32.f32 %v1624
      %v1627 = vcvt.s32.f32 %v1625
      %1628 = vmin.xlane.f32.xlu0 %v1627
      %v1629 = vpop.xlane.xlu0 %1628
      %vm1630 = vcmp.eq.f32.partialorder %v1627, %v1629
      %v1631 = vsel %vm1630, %v1626, inf
      %1632 = vmin.xlane.f32.xlu0 %v1631
      %v1633 = vpop.xlane.xlu0 %1632
      %v1634 = vcvt.f32.s32 %v1633
      %v1635 = vcvt.f32.s32 %v1629
      %v1636 = vshll.u32 %v1635, 16
      %v1637 = vadd.s32 %v1636, %v1634
      %v1638 = vsel %vm1025, %v1186, 2147483647
      %v1639 = vand.u32 %v1638, 65535
      %v1640 = vshra.s32 %v1638, 16
      %v1641 = vcvt.s32.f32 %v1639
      %v1642 = vcvt.s32.f32 %v1640
      %1643 = vmin.xlane.f32.xlu0 %v1642
      %v1644 = vpop.xlane.xlu0 %1643
      %vm1645 = vcmp.eq.f32.partialorder %v1642, %v1644
      %v1646 = vsel %vm1645, %v1641, inf
      %1647 = vmin.xlane.f32.xlu0 %v1646
      %v1648 = vpop.xlane.xlu0 %1647
      %v1649 = vcvt.f32.s32 %v1648
      %v1650 = vcvt.f32.s32 %v1644
      %v1651 = vshll.u32 %v1650, 16
      %v1652 = vadd.s32 %v1651, %v1649
      %v1653 = vsel %vm1025, %v1187, 2147483647
      %v1654 = vand.u32 %v1653, 65535
      %v1655 = vshra.s32 %v1653, 16
      %v1656 = vcvt.s32.f32 %v1654
      %v1657 = vcvt.s32.f32 %v1655
      %1658 = vmin.xlane.f32.xlu0 %v1657
      %v1659 = vpop.xlane.xlu0 %1658
      %vm1660 = vcmp.eq.f32.partialorder %v1657, %v1659
      %v1661 = vsel %vm1660, %v1656, inf
      %1662 = vmin.xlane.f32.xlu0 %v1661
      %v1663 = vpop.xlane.xlu0 %1662
      %v1664 = vcvt.f32.s32 %v1663
      %v1665 = vcvt.f32.s32 %v1659
      %v1666 = vshll.u32 %v1665, 16
      %v1667 = vadd.s32 %v1666, %v1664
      %vm1668 = vcmask 7168
      %1669 = vst.msk [vmem:[%s321] sm:$0xff] %vm1668, %v1202
      %1670 = vst.msk [vmem:[%s321 + $0x8] sm:$0xff] %vm1668, %v1217
      %1671 = vst.msk [vmem:[%s321 + $0x10] sm:$0xff] %vm1668, %v1232
      %1672 = vst.msk [vmem:[%s321 + $0x18] sm:$0xff] %vm1668, %v1247
      %1673 = vst.msk [vmem:[%s321 + $0x20] sm:$0xff] %vm1668, %v1262
      %1674 = vst.msk [vmem:[%s321 + $0x28] sm:$0xff] %vm1668, %v1277
      %1675 = vst.msk [vmem:[%s321 + $0x30] sm:$0xff] %vm1668, %v1292
      %1676 = vst.msk [vmem:[%s321 + $0x38] sm:$0xff] %vm1668, %v1307
      %1677 = vst.msk [vmem:[%s321 + $0x40] sm:$0xff] %vm1668, %v1322
      %1678 = vst.msk [vmem:[%s321 + $0x48] sm:$0xff] %vm1668, %v1337
      %1679 = vst.msk [vmem:[%s321 + $0x50] sm:$0xff] %vm1668, %v1352
      %1680 = vst.msk [vmem:[%s321 + $0x58] sm:$0xff] %vm1668, %v1367
      %1681 = vst.msk [vmem:[%s321 + $0x60] sm:$0xff] %vm1668, %v1382
      %1682 = vst.msk [vmem:[%s321 + $0x68] sm:$0xff] %vm1668, %v1397
      %1683 = vst.msk [vmem:[%s321 + $0x70] sm:$0xff] %vm1668, %v1412
      %1684 = vst.msk [vmem:[%s321 + $0x78] sm:$0xff] %vm1668, %v1427
      %1685 = vst.msk [vmem:[%s321 + $0x80] sm:$0xff] %vm1668, %v1442
      %1686 = vst.msk [vmem:[%s321 + $0x88] sm:$0xff] %vm1668, %v1457
      %1687 = vst.msk [vmem:[%s321 + $0x90] sm:$0xff] %vm1668, %v1472
      %1688 = vst.msk [vmem:[%s321 + $0x98] sm:$0xff] %vm1668, %v1487
      %1689 = vst.msk [vmem:[%s321 + $0xa0] sm:$0xff] %vm1668, %v1502
      %1690 = vst.msk [vmem:[%s321 + $0xa8] sm:$0xff] %vm1668, %v1517
      %1691 = vst.msk [vmem:[%s321 + $0xb0] sm:$0xff] %vm1668, %v1532
      %1692 = vst.msk [vmem:[%s321 + $0xb8] sm:$0xff] %vm1668, %v1547
      %1693 = vst.msk [vmem:[%s321 + $0xc0] sm:$0xff] %vm1668, %v1562
      %1694 = vst.msk [vmem:[%s321 + $0xc8] sm:$0xff] %vm1668, %v1577
      %1695 = vst.msk [vmem:[%s321 + $0xd0] sm:$0xff] %vm1668, %v1592
      %1696 = vst.msk [vmem:[%s321 + $0xd8] sm:$0xff] %vm1668, %v1607
      %1697 = vst.msk [vmem:[%s321 + $0xe0] sm:$0xff] %vm1668, %v1622
      %1698 = vst.msk [vmem:[%s321 + $0xe8] sm:$0xff] %vm1668, %v1637
      %1699 = vst.msk [vmem:[%s321 + $0xf0] sm:$0xff] %vm1668, %v1652
      %1700 = vst.msk [vmem:[%s321 + $0xf8] sm:$0xff] %vm1668, %v1667
      %s1701 = smul.u32 32, %s20
      %p1702 = scmp.lt.s32.totalorder %s1701, 63
      %s1703 = scalar_select %p1702, %s1701, 63
      %s1704 = smul.addr %s1703, 8
      %s1705 = scalar_lea.vmem %s7, %s1704
      %s1706 = smul.u32 32, %s20
      %p1707 = scmp.lt.s32.totalorder %s1706, 63
      %s1708 = scalar_select %p1707, %s1706, 63
      %s1709 = smul.addr %s1708, 8
      %s1710 = scalar_lea.vmem %s8, %s1709
      // Predicated region
      $region49: #{dqn_policy_forward.1} parent=47 // pred_check
        %p1711 = pneg %p190
      $region50: #{dqn_policy_forward.1} parent=47 // pred_check_branch
        %1713 = sbr.rel (%p1711) target = $region52
      $region51: #{dqn_policy_forward.1} parent=47 // pred_region
        %s1714 = smul.u32 32, %s20
      $region52: #{dqn_policy_forward.1} parent=47 // pred_fallthru
        _
      // Predicated region
      $region53: #{dqn_policy_forward.1} parent=47 // pred_check
        %p1715 = pneg %p216
      $region54: #{dqn_policy_forward.1} parent=47 // pred_check_branch
        %1717 = sbr.rel (%p1715) target = $region56
      $region55: #{dqn_policy_forward.1} parent=47 // pred_region
        %s1718 = smul.u32 32, %s20
      $region56: #{dqn_policy_forward.1} parent=47 // pred_fallthru
        _
    $region48: #{dqn_policy_forward.1} parent=5 // pred_fallthru
      _
    %p1719 = scmp.le.s32.totalorder 2, %s15
    // Predicated region
    $region57: #{dqn_policy_forward.1} parent=5 // pred_check
      %p1720 = pneg %p1719
    $region58: #{dqn_policy_forward.1} parent=5 // pred_check_branch
      %1722 = sbr.rel (%p1720) target = $region60
    $region59: #{dqn_policy_forward.1} parent=5 // pred_region
      %s1723 = ssub.s32 %s15, 2
      // Predicated region
      $region61: #{dqn_policy_forward.1} parent=59 // pred_check
        %p1724 = pneg %p196
      $region62: #{dqn_policy_forward.1} parent=59 // pred_check_branch
        %1726 = sbr.rel (%p1724) target = $region64
      $region63: #{dqn_policy_forward.1} parent=59 // pred_region
        %s1727 = smul.u32 32, %s21
        %p1728 = scmp.lt.s32.totalorder %s1727, 63
        %s1729 = scalar_select %p1728, %s1727, 63
        %s1730 = smul.addr %s1729, 8
        %s1731 = scalar_lea.vmem %s7, %s1730
      $region64: #{dqn_policy_forward.1} parent=59 // pred_fallthru
        _
      // Predicated region
      $region65: #{dqn_policy_forward.1} parent=59 // pred_check
        %p1732 = pneg %p222
      $region66: #{dqn_policy_forward.1} parent=59 // pred_check_branch
        %1734 = sbr.rel (%p1732) target = $region68
      $region67: #{dqn_policy_forward.1} parent=59 // pred_region
        %s1735 = smul.u32 32, %s21
        %p1736 = scmp.lt.s32.totalorder %s1735, 63
        %s1737 = scalar_select %p1736, %s1735, 63
        %s1738 = smul.addr %s1737, 8
        %s1739 = scalar_lea.vmem %s8, %s1738
      $region68: #{dqn_policy_forward.1} parent=59 // pred_fallthru
        _
    $region60: #{dqn_policy_forward.1} parent=5 // pred_fallthru
      _
  $region6: #{dqn_policy_forward.1} parent=0 // loop_footer
    %s19 = sadd.s32 1, %s15
  $region7: #{dqn_policy_forward.1} parent=0 // loop_footer_branch
    %14 = sbr.rel target = $region3
  $region8: #{dqn_policy_forward.1} parent=0 // loop_exit
    _

</llo_original>
